<compile_context>
chip_gen: v5e
topology: v5e:2x2
jax: 0.10.0
libtpu: 0.0.40
codegen_flags: <defaults>
</compile_context>

<pallas_src>
import functools

import jax
import jax.numpy as jnp
from jax import lax
from jax.experimental import pallas as pl
from jax.experimental.pallas import tpu as pltpu

IN_FEATURES = 1280   # efficientnet_v2_s classifier[1].in_features
FC = 128             # feature-chunk width (one lane tile)
N_PAD = 128          # fused-head output lanes (37 real logits, zero-padded)


def _ru(a, b):
    return (a + b - 1) // b * b


def _fashion_kernel(x_ref, ws_ref, bs_ref, wh_ref, bh_ref, out_ref, *, hc):
    tb, hw, cp = x_ref.shape        # [batch tile, spatial, padded channels]   (bf16)
    nf, _, fc = ws_ref.shape        # [feature chunks, padded channels, chunk] (bf16)
    n_hc = hw // hc                 # spatial sub-chunks (hc | hw guaranteed by wrapper)

    # Fused-head bias init; every feature chunk below accumulates into out_ref.
    out_ref[...] = jnp.broadcast_to(bh_ref[...], out_ref.shape)

    @pl.loop(0, nf)
    def _(i):
        w_c = ws_ref[i]             # [cp, FC]     stem weight chunk (bf16, resident)
        b_c = bs_ref[i]             # [1,  FC]     stem bias chunk   (f32)
        wh_c = wh_ref[i]            # [FC, N_PAD]  fused head chunk  (f32, 1/HW folded in)

        def hw_body(j, feat_acc):
            h0 = pl.multiple_of(j * hc, 16)
            xs = x_ref[:, pl.ds(h0, hc), :].reshape(tb * hc, cp)
            # Stem 1x1 "conv" chunk: bf16 x bf16 -> f32 on the MXU (full output rate at K=C).
            z = jnp.dot(xs, w_c, preferred_element_type=jnp.float32) + b_c
            # Exact SiLU via tanh: one EUP push per element instead of exp + reciprocal.
            a = 0.5 * z * (1.0 + jnp.tanh(0.5 * z))
            # Spatial sum-pool (the 1/HW lives in wh_c); sublane reduction per batch row.
            return feat_acc + jnp.sum(a.reshape(tb, hc, fc), axis=1)

        feats_c = lax.fori_loop(0, n_hc, hw_body,
                                jnp.zeros((tb, fc), jnp.float32))
        # Fused, 128-lane-padded heads: accumulate this feature chunk's contribution.
        out_ref[...] += jnp.dot(feats_c, wh_c,
                                preferred_element_type=jnp.float32,
                                precision=jax.lax.Precision.HIGHEST)


def fashion_classifier(x_nchw, params, *, b_tile=64):
    """x_nchw: [B, C, H, W] float32 (PyTorch layout). Returns (color, type, season, gender)."""
    B, C, H, W = x_nchw.shape
    HW = H * W
    (w_stem, b_stem, wc, bc, wty, bty, wse, bse, wge, bge) = params
    F = w_stem.shape[1]

    # ---- one-time host/XLA-side weight & layout prep (tiny tensors, negligible cost) ----
    cp = _ru(C, 16)                       # pad channels to one bf16 sublane tile
    f_pad = _ru(F, FC)
    nf = f_pad // FC

    # x: NCHW -> [B, HW, Cp]; F-on-lanes stem layout (robust to HW < 128), bf16 stem inputs.
    x = jnp.transpose(x_nchw.reshape(B, C, HW), (0, 2, 1))
    x = jnp.pad(x, ((0, 0), (0, 0), (0, cp - C)))

    # ---- batch tiling: pad to a multiple of 8; keep >=2 tiles when possible (v7x 2x TC) ----
    b_r = _ru(B, 8)
    tb = min(_ru(b_tile, 8), b_r)
    if b_r // tb < 2 and b_r >= 16:
        tb = _ru(-(-b_r // 2), 8)
    b_pad = _ru(b_r, tb)
    if b_pad != B:
        x = jnp.pad(x, ((0, b_pad - B), (0, 0), (0, 0)))
    x = x.astype(jnp.bfloat16)

    # spatial sub-chunk size: keep the per-iteration activation block to ~512 rows x 128 lanes.
    hc = min(HW, max(16, 512 // tb))
    hc -= hc % 16
    while hc >= 16 and HW % hc:
        hc -= 16
    if hc < 16 or HW % hc:
        hc = HW

    # stem weights: [C, F] -> bf16 chunks [nf, cp, FC]; bias -> f32 [nf, 1, FC]
    w_s = jnp.pad(w_stem, ((0, cp - C), (0, f_pad - F)))
    w_s = w_s.reshape(cp, nf, FC).transpose(1, 0, 2).astype(jnp.bfloat16)
    b_s = jnp.pad(b_stem.reshape(1, F), ((0, 0), (0, f_pad - F)))
    b_s = b_s.reshape(1, nf, FC).transpose(1, 0, 2)

    # fused heads: concat, fold the average pool's 1/HW, pad to 128 lanes, chunk over F.
    w_h = jnp.concatenate([wc, wty, wse, wge], axis=1) / float(HW)       # [F, 37]
    n_tot = w_h.shape[1]
    w_h = jnp.pad(w_h, ((0, f_pad - F), (0, N_PAD - n_tot)))             # [F_pad, 128]
    w_h = w_h.reshape(nf, FC, N_PAD)
    b_h = jnp.pad(jnp.concatenate([bc, bty, bse, bge], axis=1),
                  ((0, 0), (0, N_PAD - n_tot)))                           # [1, 128]

    grid = (b_pad // tb,)
    kernel = functools.partial(_fashion_kernel, hc=hc)

    out = pl.pallas_call(
        kernel,
        out_shape=jax.ShapeDtypeStruct((b_pad, N_PAD), jnp.float32),
        grid_spec=pltpu.PrefetchScalarGridSpec(
            num_scalar_prefetch=0,
            grid=grid,
            in_specs=[
                pl.BlockSpec((tb, HW, cp), lambda b: (b, 0, 0)),       # x (per batch tile)
                pl.BlockSpec((nf, cp, FC), lambda b: (0, 0, 0)),       # stem W      (resident)
                pl.BlockSpec((nf, 1, FC), lambda b: (0, 0, 0)),        # stem bias   (resident)
                pl.BlockSpec((nf, FC, N_PAD), lambda b: (0, 0, 0)),    # fused head W (resident)
                pl.BlockSpec((1, N_PAD), lambda b: (0, 0)),            # fused head b (resident)
            ],
            out_specs=pl.BlockSpec((tb, N_PAD), lambda b: (b, 0)),
        ),
        compiler_params=pltpu.CompilerParams(
            dimension_semantics=("parallel",),
            vmem_limit_bytes=32 * 1024 * 1024),
    )(x, w_s, b_s, w_h, b_h)

    out = out[:B]
    n_c, n_t, n_s, n_g = wc.shape[1], wty.shape[1], wse.shape[1], wge.shape[1]
    o0, o1, o2 = n_c, n_c + n_t, n_c + n_t + n_s
    return (out[:, :o0], out[:, o0:o1], out[:, o1:o2], out[:, o2:o2 + n_g])


def init_params(key, in_channels, num_colors, num_types, num_seasons, num_genders):
    """Deterministic synthetic weights; Linear-style U(-1/sqrt(fan_in), 1/sqrt(fan_in)) init."""
    ks = jax.random.split(key, 10)

    def linear(kw, kb, fan_in, fan_out):
        bound = float(fan_in) ** -0.5
        w = jax.random.uniform(kw, (fan_in, fan_out), jnp.float32, -bound, bound)
        b = jax.random.uniform(kb, (1, fan_out), jnp.float32, -bound, bound)
        return w, b

    w_stem, b_stem = linear(ks[0], ks[1], in_channels, IN_FEATURES)
    wc, bc = linear(ks[2], ks[3], IN_FEATURES, num_colors)
    wty, bty = linear(ks[4], ks[5], IN_FEATURES, num_types)
    wse, bse = linear(ks[6], ks[7], IN_FEATURES, num_seasons)
    wge, bge = linear(ks[8], ks[9], IN_FEATURES, num_genders)
    return (w_stem, b_stem, wc, bc, wty, bty, wse, bse, wge, bge)


def reference(x_nchw, params):
    """Pure-JAX reference. The stem contraction applies the same bf16 input rounding the
    kernel uses (per perf review); everything else (bias, SiLU, pool, heads) is exact f32."""
    B, C, H, W = x_nchw.shape
    (w_stem, b_stem, wc, bc, wty, bty, wse, bse, wge, bge) = params
    hp = jax.lax.Precision.HIGHEST
    x = jnp.transpose(x_nchw, (0, 2, 3, 1)).reshape(B, H * W, C)
    xb = x.astype(jnp.bfloat16).astype(jnp.float32)
    wb = w_stem.astype(jnp.bfloat16).astype(jnp.float32)
    y = jnp.einsum('bpc,cf->bpf', xb, wb, precision=hp) + b_stem.reshape(1, 1, -1)
    y = y * jax.nn.sigmoid(y)
    feats = jnp.mean(y, axis=1)
    dot = lambda a, w: jnp.dot(a, w, precision=hp)
    return (dot(feats, wc) + bc, dot(feats, wty) + bty,
            dot(feats, wse) + bse, dot(feats, wge) + bge)


if __name__ == "__main__":
    key = jax.random.PRNGKey(0)
    kx, kp = jax.random.split(key)

    B, C, H, W = 16, 3, 16, 16           # small but exercises >1 batch tile
    num_colors, num_types, num_seasons, num_genders = 10, 20, 4, 3

    x = jax.random.normal(kx, (B, C, H, W), dtype=jnp.float32)
    params = init_params(kp, C, num_colors, num_types, num_seasons, num_genders)

    outs = jax.block_until_ready(fashion_classifier(x, params))

    refs = reference(x, params)
    for o, r in zip(outs, refs):
        assert o.shape == r.shape and o.dtype == jnp.float32
        assert jnp.allclose(o, r, atol=1e-3, rtol=1e-3), "mismatch vs reference"

    print("KERNEL_OK")
</pallas_src>

<mosaic_0001>
module attributes {stable_mosaic.version = 11 : i64} {
  func.func @_fashion_kernel(%arg0: i32, %arg1: memref<8x256x16xbf16, #tpu.memory_space<vmem>>, %arg2: memref<10x16x128xbf16, #tpu.memory_space<vmem>>, %arg3: memref<10x1x128xf32, #tpu.memory_space<vmem>>, %arg4: memref<10x128x128xf32, #tpu.memory_space<vmem>>, %arg5: memref<1x128xf32, #tpu.memory_space<vmem>>, %arg6: memref<8x128xf32, #tpu.memory_space<vmem>>) attributes {dimension_semantics = [#tpu.dimension_semantics<parallel>], iteration_bounds = array<i64: 2>, scalar_prefetch = 0 : i64, scratch_operands = 0 : i64, tpu.core_type = #tpu.core_type<tc>, window_params = [{transform_indices = @transform_0, window_bounds = array<i64: 8, 256, 16>}, {pipeline_mode = #tpu.pipeline_mode<synchronous>, transform_indices = @transform_1, window_bounds = array<i64: 10, 16, 128>}, {pipeline_mode = #tpu.pipeline_mode<synchronous>, transform_indices = @transform_2, window_bounds = array<i64: 10, 1, 128>}, {pipeline_mode = #tpu.pipeline_mode<synchronous>, transform_indices = @transform_3, window_bounds = array<i64: 10, 128, 128>}, {pipeline_mode = #tpu.pipeline_mode<synchronous>, transform_indices = @transform_4, window_bounds = array<i64: 1, 128>}, {transform_indices = @transform_5, window_bounds = array<i64: 8, 128>}]} {
    %c0 = arith.constant 0 : index
    %c0_0 = arith.constant 0 : index
    %0 = vector.load %arg5[%c0, %c0_0] : memref<1x128xf32, #tpu.memory_space<vmem>>, vector<1x128xf32>
    %1 = vector.shape_cast %0 : vector<1x128xf32> to vector<1x128xf32>
    %2 = vector.broadcast %1 : vector<1x128xf32> to vector<8x128xf32>
    %c0_1 = arith.constant 0 : index
    %c0_2 = arith.constant 0 : index
    %3 = vector.load %arg6[%c0_1, %c0_2] : memref<8x128xf32, #tpu.memory_space<vmem>>, vector<8x128xf32>
    tpu.vector_store %arg6[%c0_1, %c0_2], %2 {strides = array<i32>} : memref<8x128xf32, #tpu.memory_space<vmem>>, vector<8x128xf32>,
    %c0_i32 = arith.constant 0 : i32
    %c10_i32 = arith.constant 10 : i32
    %4 = arith.addi %c0_i32, %c10_i32 : i32
    %c1_i32 = arith.constant 1 : i32
    scf.for %arg7 = %c0_i32 to %4 step %c1_i32  : i32 {
      %c1_i32_4 = arith.constant 1 : i32
      %5 = arith.muli %arg7, %c1_i32_4 : i32
      %c0_i32_5 = arith.constant 0 : i32
      %6 = arith.addi %c0_i32_5, %5 : i32
      %7 = arith.index_cast %6 : i32 to index
      %c0_6 = arith.constant 0 : index
      %c0_7 = arith.constant 0 : index
      %8 = vector.load %arg2[%7, %c0_6, %c0_7] : memref<10x16x128xbf16, #tpu.memory_space<vmem>>, vector<1x16x128xbf16>
      %9 = vector.shape_cast %8 : vector<1x16x128xbf16> to vector<16x128xbf16>
      %10 = arith.index_cast %6 : i32 to index
      %c0_8 = arith.constant 0 : index
      %c0_9 = arith.constant 0 : index
      %11 = vector.load %arg3[%10, %c0_8, %c0_9] : memref<10x1x128xf32, #tpu.memory_space<vmem>>, vector<1x1x128xf32>
      %12 = vector.shape_cast %11 : vector<1x1x128xf32> to vector<1x128xf32>
      %13 = arith.index_cast %6 : i32 to index
      %c0_10 = arith.constant 0 : index
      %c0_11 = arith.constant 0 : index
      %14 = vector.load %arg4[%13, %c0_10, %c0_11] : memref<10x128x128xf32, #tpu.memory_space<vmem>>, vector<1x128x128xf32>
      %15 = vector.shape_cast %14 : vector<1x128x128xf32> to vector<128x128xf32>
      %cst = arith.constant 0.000000e+00 : f32
      %16 = vector.broadcast %cst : f32 to vector<8x128xf32>
      %c0_i32_12 = arith.constant 0 : i32
      %c4_i32 = arith.constant 4 : i32
      %17 = arith.addi %c0_i32_12, %c4_i32 : i32
      %c1_i32_13 = arith.constant 1 : i32
      %18 = scf.for %arg8 = %c0_i32_12 to %17 step %c1_i32_13 iter_args(%arg9 = %16) -> (vector<8x128xf32>)  : i32 {
        %c64_i32 = arith.constant 64 : i32
        %23 = arith.muli %arg8, %c64_i32 : i32
        %24 = tpu.assume_multiple %23, 16 : i32
        %c0_20 = arith.constant 0 : index
        %25 = arith.index_cast %24 : i32 to index
        %c0_21 = arith.constant 0 : index
        %26 = vector.load %arg1[%c0_20, %25, %c0_21] : memref<8x256x16xbf16, #tpu.memory_space<vmem>>, vector<8x64x16xbf16>
        %27 = vector.shape_cast %26 : vector<8x64x16xbf16> to vector<512x16xbf16>
        %cst_22 = arith.constant dense<0.000000e+00> : vector<512x128xf32>
        %28 = tpu.matmul %27, %9, %cst_22 {dimension_numbers = #tpu.dot_dimension_numbers<[1], [0], [0], [1], [0, 0, 1, 1], [], []>} : vector<512x16xbf16>, vector<16x128xbf16>, vector<512x128xf32> -> vector<512x128xf32>
        %29 = vector.broadcast %12 : vector<1x128xf32> to vector<512x128xf32>
        %30 = arith.addf %28, %29 : vector<512x128xf32>
        %cst_23 = arith.constant 5.000000e-01 : f32
        %31 = vector.broadcast %cst_23 : f32 to vector<512x128xf32>
        %32 = arith.mulf %31, %30 : vector<512x128xf32>
        %cst_24 = arith.constant 5.000000e-01 : f32
        %33 = vector.broadcast %cst_24 : f32 to vector<512x128xf32>
        %34 = arith.mulf %33, %30 : vector<512x128xf32>
        %35 = math.tanh %34 : vector<512x128xf32>
        %cst_25 = arith.constant 1.000000e+00 : f32
        %36 = vector.broadcast %cst_25 : f32 to vector<512x128xf32>
        %37 = arith.addf %36, %35 : vector<512x128xf32>
        %38 = arith.mulf %32, %37 : vector<512x128xf32>
        %39 = vector.shape_cast %38 : vector<512x128xf32> to vector<8x64x128xf32>
        %cst_26 = arith.constant dense<0.000000e+00> : vector<8x128xf32>
        %40 = vector.multi_reduction <add>, %39, %cst_26 [1] : vector<8x64x128xf32> to vector<8x128xf32>
        %41 = arith.addf %arg9, %40 : vector<8x128xf32>
        scf.yield %41 : vector<8x128xf32>
      }
      %c4_i32_14 = arith.constant 4 : i32
      %c0_15 = arith.constant 0 : index
      %c0_16 = arith.constant 0 : index
      %19 = vector.load %arg6[%c0_15, %c0_16] : memref<8x128xf32, #tpu.memory_space<vmem>>, vector<8x128xf32>
      %cst_17 = arith.constant dense<0.000000e+00> : vector<8x128xf32>
      %20 = tpu.matmul %18, %15, %cst_17 {dimension_numbers = #tpu.dot_dimension_numbers<[1], [0], [0], [1], [0, 0, 1, 1], [], []>, precision = #tpu.contract_precision<fp32>} : vector<8x128xf32>, vector<128x128xf32>, vector<8x128xf32> -> vector<8x128xf32>
      %21 = arith.addf %19, %20 : vector<8x128xf32>
      %c0_18 = arith.constant 0 : index
      %c0_19 = arith.constant 0 : index
      %22 = vector.load %arg6[%c0_18, %c0_19] : memref<8x128xf32, #tpu.memory_space<vmem>>, vector<8x128xf32>
      tpu.vector_store %arg6[%c0_18, %c0_19], %21 {strides = array<i32>} : memref<8x128xf32, #tpu.memory_space<vmem>>, vector<8x128xf32>,
    }
    %c10_i32_3 = arith.constant 10 : i32
    return
  }
  func.func @transform_0(%arg0: i32) -> (i32, i32, i32) {
    %c0_i32 = arith.constant 0 : i32
    %c0_i32_0 = arith.constant 0 : i32
    %c0_i32_1 = arith.constant 0 : i32
    return %arg0, %c0_i32, %c0_i32_0 : i32, i32, i32
  }
  func.func @transform_1(%arg0: i32) -> (i32, i32, i32) {
    %c0_i32 = arith.constant 0 : i32
    %c0_i32_0 = arith.constant 0 : i32
    %c0_i32_1 = arith.constant 0 : i32
    %c0_i32_2 = arith.constant 0 : i32
    return %c0_i32, %c0_i32_0, %c0_i32_1 : i32, i32, i32
  }
  func.func @transform_2(%arg0: i32) -> (i32, i32, i32) {
    %c0_i32 = arith.constant 0 : i32
    %c0_i32_0 = arith.constant 0 : i32
    %c0_i32_1 = arith.constant 0 : i32
    %c0_i32_2 = arith.constant 0 : i32
    return %c0_i32, %c0_i32_0, %c0_i32_1 : i32, i32, i32
  }
  func.func @transform_3(%arg0: i32) -> (i32, i32, i32) {
    %c0_i32 = arith.constant 0 : i32
    %c0_i32_0 = arith.constant 0 : i32
    %c0_i32_1 = arith.constant 0 : i32
    %c0_i32_2 = arith.constant 0 : i32
    return %c0_i32, %c0_i32_0, %c0_i32_1 : i32, i32, i32
  }
  func.func @transform_4(%arg0: i32) -> (i32, i32) {
    %c0_i32 = arith.constant 0 : i32
    %c0_i32_0 = arith.constant 0 : i32
    %c0_i32_1 = arith.constant 0 : i32
    return %c0_i32, %c0_i32_0 : i32, i32
  }
  func.func @transform_5(%arg0: i32) -> (i32, i32) {
    %c0_i32 = arith.constant 0 : i32
    %c0_i32_0 = arith.constant 0 : i32
    return %arg0, %c0_i32 : i32, i32
  }
}

</mosaic_0001>

<llo_original>
// kernel: tpu_custom_call.1
$region0: #{tpu_custom_call.1}
  #allocation0 [shape = 'u32[]', space=smem, size = 0x4, offset = 0x4, fixed_abs, tag = 'smem constant byte address 0x4 - core index']
  #allocation1 [shape = 'u32[72,128]{1,0:T(1,128)}', space=vmem, size = 0x9000, scoped, tag = 'internal scratch']
  %s0 = inlined_call_operand.vmem [shape: bf16[16,256,16], index: 0, kind: input, shape index: {}]
  %s1 = inlined_call_operand.vmem [shape: bf16[10,16,128], index: 1, kind: input, shape index: {}]
  %s2 = inlined_call_operand.vmem [shape: f32[10,1,128], index: 2, kind: input, shape index: {}]
  %s3 = inlined_call_operand.vmem [shape: f32[10,128,128], index: 3, kind: input, shape index: {}]
  %s4 = inlined_call_operand.vmem [shape: f32[1,128], index: 4, kind: input, shape index: {}]
  %s5 = inlined_call_operand.hbm [shape: f32[16,128], index: 5, kind: output, shape index: {}]
  %s6 = sld [smem:[#allocation0]]
  $region67: #{tpu_custom_call.1} parent=0
    _
  %s8 = ssub.s32 1, %s6
  %s9 = scalar_select 0, %s8, %s6
  $region1: #{tpu_custom_call.1} parent=0
    #allocation2 [shape = 'u8[8192]{0}', space=vmem, size = 0x2000, scoped, tag = 'output window, operand 0']
    #allocation3 [shape = 's32[2]{0}', space=sflag, size = 0x8, scoped, tag = 'scoped memory for tpu_custom_call.1']
    %10 = vsyncpa [#allocation3], 0
    %s11 = scalar_lea.sflag [#allocation3], 1
    %12 = vsyncpa %s11, 0
    loop: start=0, step=1, limit=4
    $region2: #{tpu_custom_call.1} parent=1 // loop_pre_header
      _
    $region3: #{tpu_custom_call.1} parent=1 // loop_header
      %s14 = sphi 0, %s18
      %p15 = scmp.ge.s32.totalorder %s14, 4
      %s24 = sphi 0, %s26
      %s27 = sphi 0, %s24
      %s28 = sphi 0, %s27
      %s44 = sphi 0, %s28
      %s48 = sphi 0, %s48
      %s50 = sphi 0, %s48
      %s51 = sphi 0, %s50
      %s65 = sphi 0, %s51
      %s69 = sphi 0, %s69
      %s71 = sphi 0, %s69
      %s72 = sphi 0, %s71
      %s86 = sphi 0, %s72
      %s90 = sphi 0, %s90
      %s92 = sphi 0, %s90
      %s93 = sphi 0, %s92
      %s107 = sphi 0, %s93
      %s111 = sphi 0, %s111
      %s113 = sphi 0, %s111
      %s114 = sphi 0, %s113
      %s128 = sphi 0, %s114
      %s134 = sphi 0, %s136
      %s137 = sphi 0, %s134
      %s138 = sphi 0, %s137
      %s154 = sphi 0, %s138
    $region4: #{tpu_custom_call.1} parent=1 // loop_header_branch
      %17 = sbr.rel (%p15) target = $region8
    $region5: #{tpu_custom_call.1} parent=1 // loop_body
      %s19 = ssub.s32 %s14, 1
      %s20 = ssub.s32 %s14, 2
      %s21 = sadd.s32 %s14, 1
      %s22 = ssub.s32 %s14, %s21
      %p23 = scmp.eq.s32.totalorder %s22, 0
      %s25 = sadd.s32 %s24, 1
      %s26 = scalar_select %p23, %s24, %s25
      %p29 = pneg %p23
      %p30 = scmp.eq.s32.totalorder %s14, 1
      %p31 = por %p29, %p30
      %p32 = scmp.ne.s32.totalorder %s24, %s27
      %p33 = scmp.eq.s32.totalorder %s14, 0
      %p34 = por %p32, %p33
      %p35 = scmp.ne.s32.totalorder %s24, %s27
      %p36 = scmp.eq.s32.totalorder %s19, 1
      %p37 = por %p35, %p36
      %p38 = scmp.ne.s32.totalorder %s27, %s28
      %p39 = scmp.eq.s32.totalorder %s19, 0
      %p40 = por %p38, %p39
      %p41 = scmp.ne.s32.totalorder %s27, %s28
      %p42 = scmp.eq.s32.totalorder %s20, 1
      %p43 = por %p41, %p42
      %p45 = scmp.ne.s32.totalorder %s28, %s44
      %p46 = scmp.eq.s32.totalorder %s20, 0
      %p47 = por %p45, %p46
      %s49 = sadd.s32 %s48, 1
      %p52 = scmp.eq.s32.totalorder %s14, 1
      %p53 = scmp.ne.s32.totalorder %s48, %s50
      %p54 = scmp.eq.s32.totalorder %s14, 0
      %p55 = por %p53, %p54
      %p56 = scmp.ne.s32.totalorder %s48, %s50
      %p57 = scmp.eq.s32.totalorder %s19, 1
      %p58 = por %p56, %p57
      %p59 = scmp.ne.s32.totalorder %s50, %s51
      %p60 = scmp.eq.s32.totalorder %s19, 0
      %p61 = por %p59, %p60
      %p62 = scmp.ne.s32.totalorder %s50, %s51
      %p63 = scmp.eq.s32.totalorder %s20, 1
      %p64 = por %p62, %p63
      %p66 = scmp.ne.s32.totalorder %s51, %s65
      %p67 = scmp.eq.s32.totalorder %s20, 0
      %p68 = por %p66, %p67
      %s70 = sadd.s32 %s69, 1
      %p73 = scmp.eq.s32.totalorder %s14, 1
      %p74 = scmp.ne.s32.totalorder %s69, %s71
      %p75 = scmp.eq.s32.totalorder %s14, 0
      %p76 = por %p74, %p75
      %p77 = scmp.ne.s32.totalorder %s69, %s71
      %p78 = scmp.eq.s32.totalorder %s19, 1
      %p79 = por %p77, %p78
      %p80 = scmp.ne.s32.totalorder %s71, %s72
      %p81 = scmp.eq.s32.totalorder %s19, 0
      %p82 = por %p80, %p81
      %p83 = scmp.ne.s32.totalorder %s71, %s72
      %p84 = scmp.eq.s32.totalorder %s20, 1
      %p85 = por %p83, %p84
      %p87 = scmp.ne.s32.totalorder %s72, %s86
      %p88 = scmp.eq.s32.totalorder %s20, 0
      %p89 = por %p87, %p88
      %s91 = sadd.s32 %s90, 1
      %p94 = scmp.eq.s32.totalorder %s14, 1
      %p95 = scmp.ne.s32.totalorder %s90, %s92
      %p96 = scmp.eq.s32.totalorder %s14, 0
      %p97 = por %p95, %p96
      %p98 = scmp.ne.s32.totalorder %s90, %s92
      %p99 = scmp.eq.s32.totalorder %s19, 1
      %p100 = por %p98, %p99
      %p101 = scmp.ne.s32.totalorder %s92, %s93
      %p102 = scmp.eq.s32.totalorder %s19, 0
      %p103 = por %p101, %p102
      %p104 = scmp.ne.s32.totalorder %s92, %s93
      %p105 = scmp.eq.s32.totalorder %s20, 1
      %p106 = por %p104, %p105
      %p108 = scmp.ne.s32.totalorder %s93, %s107
      %p109 = scmp.eq.s32.totalorder %s20, 0
      %p110 = por %p108, %p109
      %s112 = sadd.s32 %s111, 1
      %p115 = scmp.eq.s32.totalorder %s14, 1
      %p116 = scmp.ne.s32.totalorder %s111, %s113
      %p117 = scmp.eq.s32.totalorder %s14, 0
      %p118 = por %p116, %p117
      %p119 = scmp.ne.s32.totalorder %s111, %s113
      %p120 = scmp.eq.s32.totalorder %s19, 1
      %p121 = por %p119, %p120
      %p122 = scmp.ne.s32.totalorder %s113, %s114
      %p123 = scmp.eq.s32.totalorder %s19, 0
      %p124 = por %p122, %p123
      %p125 = scmp.ne.s32.totalorder %s113, %s114
      %p126 = scmp.eq.s32.totalorder %s20, 1
      %p127 = por %p125, %p126
      %p129 = scmp.ne.s32.totalorder %s114, %s128
      %p130 = scmp.eq.s32.totalorder %s20, 0
      %p131 = por %p129, %p130
      %s132 = ssub.s32 %s14, %s21
      %p133 = scmp.eq.s32.totalorder %s132, 0
      %s135 = sadd.s32 %s134, 1
      %s136 = scalar_select %p133, %s134, %s135
      %p139 = pneg %p133
      %p140 = scmp.eq.s32.totalorder %s14, 1
      %p141 = por %p139, %p140
      %p142 = scmp.ne.s32.totalorder %s134, %s137
      %p143 = scmp.eq.s32.totalorder %s14, 0
      %p144 = por %p142, %p143
      %p145 = scmp.ne.s32.totalorder %s134, %s137
      %p146 = scmp.eq.s32.totalorder %s19, 1
      %p147 = por %p145, %p146
      %p148 = scmp.ne.s32.totalorder %s137, %s138
      %p149 = scmp.eq.s32.totalorder %s19, 0
      %p150 = por %p148, %p149
      %p151 = scmp.ne.s32.totalorder %s137, %s138
      %p152 = scmp.eq.s32.totalorder %s20, 1
      %p153 = por %p151, %p152
      %p155 = scmp.ne.s32.totalorder %s138, %s154
      %p156 = scmp.eq.s32.totalorder %s20, 0
      %p157 = por %p155, %p156
      %p158 = scmp.le.s32.totalorder 1, %s14
      %p159 = scmp.lt.s32.totalorder %s14, 3
      %p160 = pnand %p158, %p159
      %p161 = pneg %p160
      // Predicated region
      $region9: #{tpu_custom_call.1} parent=5 // pred_check
        _
      $region10: #{tpu_custom_call.1} parent=5 // pred_check_branch
        %163 = sbr.rel (%p160) target = $region12
      $region11: #{tpu_custom_call.1} parent=5 // pred_region
        %s164 = ssub.s32 %s14, 1
        // Predicated region
        $region13: #{tpu_custom_call.1} parent=11 // pred_check
          %p165 = pneg %p61
        $region14: #{tpu_custom_call.1} parent=11 // pred_check_branch
          %167 = sbr.rel (%p165) target = $region16
        $region15: #{tpu_custom_call.1} parent=11 // pred_region
          _
        $region16: #{tpu_custom_call.1} parent=11 // pred_fallthru
          _
        // Predicated region
        $region17: #{tpu_custom_call.1} parent=11 // pred_check
          %p168 = pneg %p82
        $region18: #{tpu_custom_call.1} parent=11 // pred_check_branch
          %170 = sbr.rel (%p168) target = $region20
        $region19: #{tpu_custom_call.1} parent=11 // pred_region
          _
        $region20: #{tpu_custom_call.1} parent=11 // pred_fallthru
          _
        // Predicated region
        $region21: #{tpu_custom_call.1} parent=11 // pred_check
          %p171 = pneg %p103
        $region22: #{tpu_custom_call.1} parent=11 // pred_check_branch
          %173 = sbr.rel (%p171) target = $region24
        $region23: #{tpu_custom_call.1} parent=11 // pred_region
          _
        $region24: #{tpu_custom_call.1} parent=11 // pred_fallthru
          _
        // Predicated region
        $region25: #{tpu_custom_call.1} parent=11 // pred_check
          %p174 = pneg %p124
        $region26: #{tpu_custom_call.1} parent=11 // pred_check_branch
          %176 = sbr.rel (%p174) target = $region28
        $region27: #{tpu_custom_call.1} parent=11 // pred_region
          _
        $region28: #{tpu_custom_call.1} parent=11 // pred_fallthru
          _
      $region12: #{tpu_custom_call.1} parent=5 // pred_fallthru
        _
      %p177 = scmp.lt.s32.totalorder %s14, 2
      // Predicated region
      $region29: #{tpu_custom_call.1} parent=5 // pred_check
        %p178 = pneg %p177
      $region30: #{tpu_custom_call.1} parent=5 // pred_check_branch
        %180 = sbr.rel (%p178) target = $region32
      $region31: #{tpu_custom_call.1} parent=5 // pred_region
        // Predicated region
        $region33: #{tpu_custom_call.1} parent=31 // pred_check
          %p181 = pneg %p34
        $region34: #{tpu_custom_call.1} parent=31 // pred_check_branch
          %183 = sbr.rel (%p181) target = $region36
        $region35: #{tpu_custom_call.1} parent=31 // pred_region
          %s184 = smul.u32 8, %s14
          %p185 = scmp.lt.s32.totalorder %s184, 15
          %s186 = scalar_select %p185, %s184, 15
          %s187 = smul.addr %s186, 32
          %s188 = smul.addr %s187, 4
          %s189 = scalar_lea.vmem %s0, %s188
          %s190 = smul.u32 8, %s14
        $region36: #{tpu_custom_call.1} parent=31 // pred_fallthru
          _
      $region32: #{tpu_custom_call.1} parent=5 // pred_fallthru
        _
      %p191 = scmp.le.s32.totalorder 1, %s14
      %p192 = scmp.lt.s32.totalorder %s14, 3
      %p193 = pnand %p191, %p192
      %p194 = pneg %p193
      // Predicated region
      $region37: #{tpu_custom_call.1} parent=5 // pred_check
        _
      $region38: #{tpu_custom_call.1} parent=5 // pred_check_branch
        %196 = sbr.rel (%p193) target = $region40
      $region39: #{tpu_custom_call.1} parent=5 // pred_region
        %s197 = ssub.s32 %s14, 1
        %s198 = smul.u32 8, %s19
        %p199 = scmp.lt.s32.totalorder %s198, 15
        %s200 = scalar_select %p199, %s198, 15
        %s201 = smul.addr %s200, 32
        %s202 = smul.addr %s201, 4
        %s203 = scalar_lea.vmem %s0, %s202
        %p204 = pneg %p40
        %p205 = pneg %p37
        %p206 = pneg %p61
        %p207 = pneg %p58
        %p208 = pneg %p82
        %p209 = pneg %p79
        %p210 = pneg %p103
        %p211 = pneg %p100
        %p212 = pneg %p124
        %p213 = pneg %p121
        %p214 = pneg %p150
        %p215 = pneg %p147
        %s216 = sand.u32 %s137, 1
        %s217 = scalar_lea.sflag [#allocation3], %s216
        %s218 = sand.u32 %s137, 1
        %s219 = smul.addr %s218, 8
        %s220 = scalar_lea.vmem [#allocation2], %s219
        %s221 = smul.u32 8, %s19
        %p222 = scmp.lt.s32.totalorder %s221, 15
        %s223 = scalar_select %p222, %s221, 15
        %s224 = smul.addr %s223, 32
        %s225 = smul.addr %s224, 4
        %s226 = scalar_lea.vmem %s0, %s225
        %s227 = smul.u32 8, %s19
        %v229 = vld [vmem:[%s4] sm:$0x1]
        %v231 = vperm.slane %v229, 0
        %233 = vst [vmem:[%s220] sm:$0xff] %v231
        loop: start=0, step=1, limit=10
        $region41: #{tpu_custom_call.1} parent=39 // loop_pre_header
          _
        $region42: #{tpu_custom_call.1} parent=39 // loop_header
          %s235 = sphi 0, %s239
          %p236 = scmp.ge.s32.totalorder %s235, 10
        $region43: #{tpu_custom_call.1} parent=39 // loop_header_branch
          %238 = sbr.rel (%p236) target = $region47
        $region44: #{tpu_custom_call.1} parent=39 // loop_body
          %s240 = smul.u32 %s235, 2
          %s241 = smul.addr %s240, 4
          %s242 = scalar_lea.vmem %s1, %s241
          %v243 = vld [vmem:[%s242] sm:$0xf]
          %v244 = vld [vmem:[%s242 + $0x4] sm:$0xf]
          %s245 = scalar_lea.vmem %s2, %s235
          %v246 = vld [vmem:[%s245] sm:$0x1]
          %s247 = smul.u32 %s235, 128
          %s248 = scalar_lea.vmem %s3, %s247
          %v249 = vld [vmem:[%s248] sm:$0xff]
          %v250 = vld [vmem:[%s248 + $0x8] sm:$0xff]
          %v251 = vld [vmem:[%s248 + $0x10] sm:$0xff]
          %v252 = vld [vmem:[%s248 + $0x18] sm:$0xff]
          %v253 = vld [vmem:[%s248 + $0x20] sm:$0xff]
          %v254 = vld [vmem:[%s248 + $0x28] sm:$0xff]
          %v255 = vld [vmem:[%s248 + $0x30] sm:$0xff]
          %v256 = vld [vmem:[%s248 + $0x38] sm:$0xff]
          %v257 = vld [vmem:[%s248 + $0x40] sm:$0xff]
          %v258 = vld [vmem:[%s248 + $0x48] sm:$0xff]
          %v259 = vld [vmem:[%s248 + $0x50] sm:$0xff]
          %v260 = vld [vmem:[%s248 + $0x58] sm:$0xff]
          %v261 = vld [vmem:[%s248 + $0x60] sm:$0xff]
          %v262 = vld [vmem:[%s248 + $0x68] sm:$0xff]
          %v263 = vld [vmem:[%s248 + $0x70] sm:$0xff]
          %v264 = vld [vmem:[%s248 + $0x78] sm:$0xff]
          loop: start=0, step=1, limit=4
          $region48: #{tpu_custom_call.1} parent=44 // loop_pre_header
            _
          $region49: #{tpu_custom_call.1} parent=44 // loop_header
            %s266 = sphi 0, %s270
            %p267 = scmp.ge.s32.totalorder %s266, 4
            %v271 = vphi 0.0, %v1143
            %v272 = vphi 0.0, %v1144
            %v273 = vphi 0.0, %v1145
            %v274 = vphi 0.0, %v1146
            %v275 = vphi 0.0, %v1147
            %v276 = vphi 0.0, %v1148
            %v277 = vphi 0.0, %v1149
            %v278 = vphi 0.0, %v1150
          $region50: #{tpu_custom_call.1} parent=44 // loop_header_branch
            %269 = sbr.rel (%p267) target = $region54
          $region51: #{tpu_custom_call.1} parent=44 // loop_body
            %s279 = smul.u32 %s266, 64
            %s280 = sshra.s32 %s279, 3
            %s281 = sand.u32 %s279, 7
            %s282 = smul.addr %s280, 4
            %s283 = scalar_lea.vmem %s226, %s282
            %v284 = vld [vmem:[%s283] sm:$0xf]
            %v285 = vld [vmem:[%s283 + $0x4] sm:$0xf]
            %v286 = vld [vmem:[%s283 + $0x8] sm:$0xf]
            %v287 = vld [vmem:[%s283 + $0xc] sm:$0xf]
            %v288 = vld [vmem:[%s283 + $0x10] sm:$0xf]
            %v289 = vld [vmem:[%s283 + $0x14] sm:$0xf]
            %v290 = vld [vmem:[%s283 + $0x18] sm:$0xf]
            %v291 = vld [vmem:[%s283 + $0x1c] sm:$0xf]
            %v292 = vld [vmem:[%s283 + $0x80] sm:$0xf]
            %v293 = vld [vmem:[%s283 + $0x84] sm:$0xf]
            %v294 = vld [vmem:[%s283 + $0x88] sm:$0xf]
            %v295 = vld [vmem:[%s283 + $0x8c] sm:$0xf]
            %v296 = vld [vmem:[%s283 + $0x90] sm:$0xf]
            %v297 = vld [vmem:[%s283 + $0x94] sm:$0xf]
            %v298 = vld [vmem:[%s283 + $0x98] sm:$0xf]
            %v299 = vld [vmem:[%s283 + $0x9c] sm:$0xf]
            %v300 = vld [vmem:[%s283 + $0x100] sm:$0xf]
            %v301 = vld [vmem:[%s283 + $0x104] sm:$0xf]
            %v302 = vld [vmem:[%s283 + $0x108] sm:$0xf]
            %v303 = vld [vmem:[%s283 + $0x10c] sm:$0xf]
            %v304 = vld [vmem:[%s283 + $0x110] sm:$0xf]
            %v305 = vld [vmem:[%s283 + $0x114] sm:$0xf]
            %v306 = vld [vmem:[%s283 + $0x118] sm:$0xf]
            %v307 = vld [vmem:[%s283 + $0x11c] sm:$0xf]
            %v308 = vld [vmem:[%s283 + $0x180] sm:$0xf]
            %v309 = vld [vmem:[%s283 + $0x184] sm:$0xf]
            %v310 = vld [vmem:[%s283 + $0x188] sm:$0xf]
            %v311 = vld [vmem:[%s283 + $0x18c] sm:$0xf]
            %v312 = vld [vmem:[%s283 + $0x190] sm:$0xf]
            %v313 = vld [vmem:[%s283 + $0x194] sm:$0xf]
            %v314 = vld [vmem:[%s283 + $0x198] sm:$0xf]
            %v315 = vld [vmem:[%s283 + $0x19c] sm:$0xf]
            %v316 = vld [vmem:[%s283 + $0x200] sm:$0xf]
            %v317 = vld [vmem:[%s283 + $0x204] sm:$0xf]
            %v318 = vld [vmem:[%s283 + $0x208] sm:$0xf]
            %v319 = vld [vmem:[%s283 + $0x20c] sm:$0xf]
            %v320 = vld [vmem:[%s283 + $0x210] sm:$0xf]
            %v321 = vld [vmem:[%s283 + $0x214] sm:$0xf]
            %v322 = vld [vmem:[%s283 + $0x218] sm:$0xf]
            %v323 = vld [vmem:[%s283 + $0x21c] sm:$0xf]
            %v324 = vld [vmem:[%s283 + $0x280] sm:$0xf]
            %v325 = vld [vmem:[%s283 + $0x284] sm:$0xf]
            %v326 = vld [vmem:[%s283 + $0x288] sm:$0xf]
            %v327 = vld [vmem:[%s283 + $0x28c] sm:$0xf]
            %v328 = vld [vmem:[%s283 + $0x290] sm:$0xf]
            %v329 = vld [vmem:[%s283 + $0x294] sm:$0xf]
            %v330 = vld [vmem:[%s283 + $0x298] sm:$0xf]
            %v331 = vld [vmem:[%s283 + $0x29c] sm:$0xf]
            %v332 = vld [vmem:[%s283 + $0x300] sm:$0xf]
            %v333 = vld [vmem:[%s283 + $0x304] sm:$0xf]
            %v334 = vld [vmem:[%s283 + $0x308] sm:$0xf]
            %v335 = vld [vmem:[%s283 + $0x30c] sm:$0xf]
            %v336 = vld [vmem:[%s283 + $0x310] sm:$0xf]
            %v337 = vld [vmem:[%s283 + $0x314] sm:$0xf]
            %v338 = vld [vmem:[%s283 + $0x318] sm:$0xf]
            %v339 = vld [vmem:[%s283 + $0x31c] sm:$0xf]
            %v340 = vld [vmem:[%s283 + $0x380] sm:$0xf]
            %v341 = vld [vmem:[%s283 + $0x384] sm:$0xf]
            %v342 = vld [vmem:[%s283 + $0x388] sm:$0xf]
            %v343 = vld [vmem:[%s283 + $0x38c] sm:$0xf]
            %v344 = vld [vmem:[%s283 + $0x390] sm:$0xf]
            %v345 = vld [vmem:[%s283 + $0x394] sm:$0xf]
            %v346 = vld [vmem:[%s283 + $0x398] sm:$0xf]
            %v347 = vld [vmem:[%s283 + $0x39c] sm:$0xf]
            %v349 = vperm.slane %v246, 0
            %v415 = vunpack.c.l.b16 %v284
            %v416 = vunpack.c.l.b16 %v285
            %v417 = vunpack.c.l.b16 %v286
            %v418 = vunpack.c.l.b16 %v287
            %v419 = vunpack.c.l.b16 %v288
            %v420 = vunpack.c.l.b16 %v289
            %v421 = vunpack.c.l.b16 %v290
            %v422 = vunpack.c.l.b16 %v291
            %v423 = vunpack.c.l.b16 %v292
            %v424 = vunpack.c.l.b16 %v293
            %v425 = vunpack.c.l.b16 %v294
            %v426 = vunpack.c.l.b16 %v295
            %v427 = vunpack.c.l.b16 %v296
            %v428 = vunpack.c.l.b16 %v297
            %v429 = vunpack.c.l.b16 %v298
            %v430 = vunpack.c.l.b16 %v299
            %v431 = vunpack.c.l.b16 %v300
            %v432 = vunpack.c.l.b16 %v301
            %v433 = vunpack.c.l.b16 %v302
            %v434 = vunpack.c.l.b16 %v303
            %v435 = vunpack.c.l.b16 %v304
            %v436 = vunpack.c.l.b16 %v305
            %v437 = vunpack.c.l.b16 %v306
            %v438 = vunpack.c.l.b16 %v307
            %v439 = vunpack.c.l.b16 %v308
            %v440 = vunpack.c.l.b16 %v309
            %v441 = vunpack.c.l.b16 %v310
            %v442 = vunpack.c.l.b16 %v311
            %v443 = vunpack.c.l.b16 %v312
            %v444 = vunpack.c.l.b16 %v313
            %v445 = vunpack.c.l.b16 %v314
            %v446 = vunpack.c.l.b16 %v315
            %v447 = vunpack.c.l.b16 %v316
            %v448 = vunpack.c.l.b16 %v317
            %v449 = vunpack.c.l.b16 %v318
            %v450 = vunpack.c.l.b16 %v319
            %v451 = vunpack.c.l.b16 %v320
            %v452 = vunpack.c.l.b16 %v321
            %v453 = vunpack.c.l.b16 %v322
            %v454 = vunpack.c.l.b16 %v323
            %v455 = vunpack.c.l.b16 %v324
            %v456 = vunpack.c.l.b16 %v325
            %v457 = vunpack.c.l.b16 %v326
            %v458 = vunpack.c.l.b16 %v327
            %v459 = vunpack.c.l.b16 %v328
            %v460 = vunpack.c.l.b16 %v329
            %v461 = vunpack.c.l.b16 %v330
            %v462 = vunpack.c.l.b16 %v331
            %v463 = vunpack.c.l.b16 %v332
            %v464 = vunpack.c.l.b16 %v333
            %v465 = vunpack.c.l.b16 %v334
            %v466 = vunpack.c.l.b16 %v335
            %v467 = vunpack.c.l.b16 %v336
            %v468 = vunpack.c.l.b16 %v337
            %v469 = vunpack.c.l.b16 %v338
            %v470 = vunpack.c.l.b16 %v339
            %v471 = vunpack.c.l.b16 %v340
            %v472 = vunpack.c.l.b16 %v341
            %v473 = vunpack.c.l.b16 %v342
            %v474 = vunpack.c.l.b16 %v343
            %v475 = vunpack.c.l.b16 %v344
            %v476 = vunpack.c.l.b16 %v345
            %v477 = vunpack.c.l.b16 %v346
            %v478 = vunpack.c.l.b16 %v347
            %v479 = vpack.c.b16 %v416, %v415
            %v480 = vpack.c.b16 %v418, %v417
            %v481 = vpack.c.b16 %v420, %v419
            %v482 = vpack.c.b16 %v422, %v421
            %v483 = vpack.c.b16 %v424, %v423
            %v484 = vpack.c.b16 %v426, %v425
            %v485 = vpack.c.b16 %v428, %v427
            %v486 = vpack.c.b16 %v430, %v429
            %v487 = vpack.c.b16 %v432, %v431
            %v488 = vpack.c.b16 %v434, %v433
            %v489 = vpack.c.b16 %v436, %v435
            %v490 = vpack.c.b16 %v438, %v437
            %v491 = vpack.c.b16 %v440, %v439
            %v492 = vpack.c.b16 %v442, %v441
            %v493 = vpack.c.b16 %v444, %v443
            %v494 = vpack.c.b16 %v446, %v445
            %v495 = vpack.c.b16 %v448, %v447
            %v496 = vpack.c.b16 %v450, %v449
            %v497 = vpack.c.b16 %v452, %v451
            %v498 = vpack.c.b16 %v454, %v453
            %v499 = vpack.c.b16 %v456, %v455
            %v500 = vpack.c.b16 %v458, %v457
            %v501 = vpack.c.b16 %v460, %v459
            %v502 = vpack.c.b16 %v462, %v461
            %v503 = vpack.c.b16 %v464, %v463
            %v504 = vpack.c.b16 %v466, %v465
            %v505 = vpack.c.b16 %v468, %v467
            %v506 = vpack.c.b16 %v470, %v469
            %v507 = vpack.c.b16 %v472, %v471
            %v508 = vpack.c.b16 %v474, %v473
            %v509 = vpack.c.b16 %v476, %v475
            %v510 = vpack.c.b16 %v478, %v477
            %v513 = vunpack.c.l.b16 %v243
            %v514 = vunpack.c.l.b16 %v244
            %v515 = vpack.c.b16 %v514, %v513
            %vm517 = vcmask 130048
            %v519 = vsel %vm517, %v479, 0
            %v522 = vsel %vm517, %v480, 0
            %v525 = vsel %vm517, %v481, 0
            %v528 = vsel %vm517, %v482, 0
            %v531 = vsel %vm517, %v483, 0
            %v534 = vsel %vm517, %v484, 0
            %v537 = vsel %vm517, %v485, 0
            %v540 = vsel %vm517, %v486, 0
            %v543 = vsel %vm517, %v487, 0
            %v546 = vsel %vm517, %v488, 0
            %v549 = vsel %vm517, %v489, 0
            %v552 = vsel %vm517, %v490, 0
            %v555 = vsel %vm517, %v491, 0
            %v558 = vsel %vm517, %v492, 0
            %v561 = vsel %vm517, %v493, 0
            %v564 = vsel %vm517, %v494, 0
            %v567 = vsel %vm517, %v495, 0
            %v570 = vsel %vm517, %v496, 0
            %v573 = vsel %vm517, %v497, 0
            %v576 = vsel %vm517, %v498, 0
            %v579 = vsel %vm517, %v499, 0
            %v582 = vsel %vm517, %v500, 0
            %v585 = vsel %vm517, %v501, 0
            %v588 = vsel %vm517, %v502, 0
            %v591 = vsel %vm517, %v503, 0
            %v594 = vsel %vm517, %v504, 0
            %v597 = vsel %vm517, %v505, 0
            %v600 = vsel %vm517, %v506, 0
            %v603 = vsel %vm517, %v507, 0
            %v606 = vsel %vm517, %v508, 0
            %v609 = vsel %vm517, %v509, 0
            %v612 = vsel %vm517, %v510, 0
            %614 = vmatpush.bf16.msra.mxu0 0
            %615 = vmatpush.bf16.msra.mxu0 0
            %616 = vmatpush.bf16.msra.mxu0 0
            %617 = vmatpush.bf16.msra.mxu0 0
            %618 = vmatpush.bf16.msra.mxu0 0
            %619 = vmatpush.bf16.msra.mxu0 0
            %620 = vmatpush.bf16.msra.mxu0 0
            %621 = vmatpush.bf16.msra.mxu0 %v515
            %622 = vmatmul.bf16.gmra.mxu0 %v519
            %v623 = vpop.f32.mrf.mxu0
            %v624 = vadd.f32 %v349, %v623
            %v625 = vpop.f32.mrf.mxu0
            %v626 = vadd.f32 %v349, %v625
            %627 = vmatmul.bf16.gmra.mxu0 %v522
            %v628 = vpop.f32.mrf.mxu0
            %v629 = vadd.f32 %v349, %v628
            %v630 = vpop.f32.mrf.mxu0
            %v631 = vadd.f32 %v349, %v630
            %632 = vmatmul.bf16.gmra.mxu0 %v525
            %v633 = vpop.f32.mrf.mxu0
            %v634 = vadd.f32 %v349, %v633
            %v635 = vpop.f32.mrf.mxu0
            %v636 = vadd.f32 %v349, %v635
            %637 = vmatmul.bf16.gmra.mxu0 %v528
            %v638 = vpop.f32.mrf.mxu0
            %v639 = vadd.f32 %v349, %v638
            %v640 = vpop.f32.mrf.mxu0
            %v641 = vadd.f32 %v349, %v640
            %642 = vmatmul.bf16.gmra.mxu0 %v531
            %v643 = vpop.f32.mrf.mxu0
            %v644 = vadd.f32 %v349, %v643
            %v645 = vpop.f32.mrf.mxu0
            %v646 = vadd.f32 %v349, %v645
            %647 = vmatmul.bf16.gmra.mxu0 %v534
            %v648 = vpop.f32.mrf.mxu0
            %v649 = vadd.f32 %v349, %v648
            %v650 = vpop.f32.mrf.mxu0
            %v651 = vadd.f32 %v349, %v650
            %652 = vmatmul.bf16.gmra.mxu0 %v537
            %v653 = vpop.f32.mrf.mxu0
            %v654 = vadd.f32 %v349, %v653
            %v655 = vpop.f32.mrf.mxu0
            %v656 = vadd.f32 %v349, %v655
            %657 = vmatmul.bf16.gmra.mxu0 %v540
            %v658 = vpop.f32.mrf.mxu0
            %v659 = vadd.f32 %v349, %v658
            %v660 = vpop.f32.mrf.mxu0
            %v661 = vadd.f32 %v349, %v660
            %662 = vmatmul.bf16.gmra.mxu0 %v543
            %v663 = vpop.f32.mrf.mxu0
            %v664 = vadd.f32 %v349, %v663
            %v665 = vpop.f32.mrf.mxu0
            %v666 = vadd.f32 %v349, %v665
            %667 = vmatmul.bf16.gmra.mxu0 %v546
            %v668 = vpop.f32.mrf.mxu0
            %v669 = vadd.f32 %v349, %v668
            %v670 = vpop.f32.mrf.mxu0
            %v671 = vadd.f32 %v349, %v670
            %672 = vmatmul.bf16.gmra.mxu0 %v549
            %v673 = vpop.f32.mrf.mxu0
            %v674 = vadd.f32 %v349, %v673
            %v675 = vpop.f32.mrf.mxu0
            %v676 = vadd.f32 %v349, %v675
            %677 = vmatmul.bf16.gmra.mxu0 %v552
            %v678 = vpop.f32.mrf.mxu0
            %v679 = vadd.f32 %v349, %v678
            %v680 = vpop.f32.mrf.mxu0
            %v681 = vadd.f32 %v349, %v680
            %682 = vmatmul.bf16.gmra.mxu0 %v555
            %v683 = vpop.f32.mrf.mxu0
            %v684 = vadd.f32 %v349, %v683
            %v685 = vpop.f32.mrf.mxu0
            %v686 = vadd.f32 %v349, %v685
            %687 = vmatmul.bf16.gmra.mxu0 %v558
            %v688 = vpop.f32.mrf.mxu0
            %v689 = vadd.f32 %v349, %v688
            %v690 = vpop.f32.mrf.mxu0
            %v691 = vadd.f32 %v349, %v690
            %692 = vmatmul.bf16.gmra.mxu0 %v561
            %v693 = vpop.f32.mrf.mxu0
            %v694 = vadd.f32 %v349, %v693
            %v695 = vpop.f32.mrf.mxu0
            %v696 = vadd.f32 %v349, %v695
            %697 = vmatmul.bf16.gmra.mxu0 %v564
            %v698 = vpop.f32.mrf.mxu0
            %v699 = vadd.f32 %v349, %v698
            %v700 = vpop.f32.mrf.mxu0
            %v701 = vadd.f32 %v349, %v700
            %702 = vmatmul.bf16.gmra.mxu0 %v567
            %v703 = vpop.f32.mrf.mxu0
            %v704 = vadd.f32 %v349, %v703
            %v705 = vpop.f32.mrf.mxu0
            %v706 = vadd.f32 %v349, %v705
            %707 = vmatmul.bf16.gmra.mxu0 %v570
            %v708 = vpop.f32.mrf.mxu0
            %v709 = vadd.f32 %v349, %v708
            %v710 = vpop.f32.mrf.mxu0
            %v711 = vadd.f32 %v349, %v710
            %712 = vmatmul.bf16.gmra.mxu0 %v573
            %v713 = vpop.f32.mrf.mxu0
            %v714 = vadd.f32 %v349, %v713
            %v715 = vpop.f32.mrf.mxu0
            %v716 = vadd.f32 %v349, %v715
            %717 = vmatmul.bf16.gmra.mxu0 %v576
            %v718 = vpop.f32.mrf.mxu0
            %v719 = vadd.f32 %v349, %v718
            %v720 = vpop.f32.mrf.mxu0
            %v721 = vadd.f32 %v349, %v720
            %722 = vmatmul.bf16.gmra.mxu0 %v579
            %v723 = vpop.f32.mrf.mxu0
            %v724 = vadd.f32 %v349, %v723
            %v725 = vpop.f32.mrf.mxu0
            %v726 = vadd.f32 %v349, %v725
            %727 = vmatmul.bf16.gmra.mxu0 %v582
            %v728 = vpop.f32.mrf.mxu0
            %v729 = vadd.f32 %v349, %v728
            %v730 = vpop.f32.mrf.mxu0
            %v731 = vadd.f32 %v349, %v730
            %732 = vmatmul.bf16.gmra.mxu0 %v585
            %v733 = vpop.f32.mrf.mxu0
            %v734 = vadd.f32 %v349, %v733
            %v735 = vpop.f32.mrf.mxu0
            %v736 = vadd.f32 %v349, %v735
            %737 = vmatmul.bf16.gmra.mxu0 %v588
            %v738 = vpop.f32.mrf.mxu0
            %v739 = vadd.f32 %v349, %v738
            %v740 = vpop.f32.mrf.mxu0
            %v741 = vadd.f32 %v349, %v740
            %742 = vmatmul.bf16.gmra.mxu0 %v591
            %v743 = vpop.f32.mrf.mxu0
            %v744 = vadd.f32 %v349, %v743
            %v745 = vpop.f32.mrf.mxu0
            %v746 = vadd.f32 %v349, %v745
            %747 = vmatmul.bf16.gmra.mxu0 %v594
            %v748 = vpop.f32.mrf.mxu0
            %v749 = vadd.f32 %v349, %v748
            %v750 = vpop.f32.mrf.mxu0
            %v751 = vadd.f32 %v349, %v750
            %752 = vmatmul.bf16.gmra.mxu0 %v597
            %v753 = vpop.f32.mrf.mxu0
            %v754 = vadd.f32 %v349, %v753
            %v755 = vpop.f32.mrf.mxu0
            %v756 = vadd.f32 %v349, %v755
            %757 = vmatmul.bf16.gmra.mxu0 %v600
            %v758 = vpop.f32.mrf.mxu0
            %v759 = vadd.f32 %v349, %v758
            %v760 = vpop.f32.mrf.mxu0
            %v761 = vadd.f32 %v349, %v760
            %762 = vmatmul.bf16.gmra.mxu0 %v603
            %v763 = vpop.f32.mrf.mxu0
            %v764 = vadd.f32 %v349, %v763
            %v765 = vpop.f32.mrf.mxu0
            %v766 = vadd.f32 %v349, %v765
            %767 = vmatmul.bf16.gmra.mxu0 %v606
            %v768 = vpop.f32.mrf.mxu0
            %v769 = vadd.f32 %v349, %v768
            %v770 = vpop.f32.mrf.mxu0
            %v771 = vadd.f32 %v349, %v770
            %772 = vmatmul.bf16.gmra.mxu0 %v609
            %v773 = vpop.f32.mrf.mxu0
            %v774 = vadd.f32 %v349, %v773
            %v775 = vpop.f32.mrf.mxu0
            %v776 = vadd.f32 %v349, %v775
            %777 = vmatmul.bf16.gmra.mxu0 %v612
            %v778 = vpop.f32.mrf.mxu0
            %v779 = vadd.f32 %v349, %v778
            %v780 = vpop.f32.mrf.mxu0
            %v781 = vadd.f32 %v349, %v780
            %782 = vdwg.mxu0
            %v783 = vmul.f32 %v624, 0.5
            %v784 = vmul.f32 %v626, 0.5
            %v785 = vmul.f32 %v629, 0.5
            %v786 = vmul.f32 %v631, 0.5
            %v787 = vmul.f32 %v634, 0.5
            %v788 = vmul.f32 %v636, 0.5
            %v789 = vmul.f32 %v639, 0.5
            %v790 = vmul.f32 %v641, 0.5
            %v791 = vmul.f32 %v644, 0.5
            %v792 = vmul.f32 %v646, 0.5
            %v793 = vmul.f32 %v649, 0.5
            %v794 = vmul.f32 %v651, 0.5
            %v795 = vmul.f32 %v654, 0.5
            %v796 = vmul.f32 %v656, 0.5
            %v797 = vmul.f32 %v659, 0.5
            %v798 = vmul.f32 %v661, 0.5
            %v799 = vmul.f32 %v664, 0.5
            %v800 = vmul.f32 %v666, 0.5
            %v801 = vmul.f32 %v669, 0.5
            %v802 = vmul.f32 %v671, 0.5
            %v803 = vmul.f32 %v674, 0.5
            %v804 = vmul.f32 %v676, 0.5
            %v805 = vmul.f32 %v679, 0.5
            %v806 = vmul.f32 %v681, 0.5
            %v807 = vmul.f32 %v684, 0.5
            %v808 = vmul.f32 %v686, 0.5
            %v809 = vmul.f32 %v689, 0.5
            %v810 = vmul.f32 %v691, 0.5
            %v811 = vmul.f32 %v694, 0.5
            %v812 = vmul.f32 %v696, 0.5
            %v813 = vmul.f32 %v699, 0.5
            %v814 = vmul.f32 %v701, 0.5
            %v815 = vmul.f32 %v704, 0.5
            %v816 = vmul.f32 %v706, 0.5
            %v817 = vmul.f32 %v709, 0.5
            %v818 = vmul.f32 %v711, 0.5
            %v819 = vmul.f32 %v714, 0.5
            %v820 = vmul.f32 %v716, 0.5
            %v821 = vmul.f32 %v719, 0.5
            %v822 = vmul.f32 %v721, 0.5
            %v823 = vmul.f32 %v724, 0.5
            %v824 = vmul.f32 %v726, 0.5
            %v825 = vmul.f32 %v729, 0.5
            %v826 = vmul.f32 %v731, 0.5
            %v827 = vmul.f32 %v734, 0.5
            %v828 = vmul.f32 %v736, 0.5
            %v829 = vmul.f32 %v739, 0.5
            %v830 = vmul.f32 %v741, 0.5
            %v831 = vmul.f32 %v744, 0.5
            %v832 = vmul.f32 %v746, 0.5
            %v833 = vmul.f32 %v749, 0.5
            %v834 = vmul.f32 %v751, 0.5
            %v835 = vmul.f32 %v754, 0.5
            %v836 = vmul.f32 %v756, 0.5
            %v837 = vmul.f32 %v759, 0.5
            %v838 = vmul.f32 %v761, 0.5
            %v839 = vmul.f32 %v764, 0.5
            %v840 = vmul.f32 %v766, 0.5
            %v841 = vmul.f32 %v769, 0.5
            %v842 = vmul.f32 %v771, 0.5
            %v843 = vmul.f32 %v774, 0.5
            %v844 = vmul.f32 %v776, 0.5
            %v845 = vmul.f32 %v779, 0.5
            %v846 = vmul.f32 %v781, 0.5
            %v847 = vtanh.pop %v783
            %v848 = vtanh.pop %v784
            %v849 = vtanh.pop %v785
            %v850 = vtanh.pop %v786
            %v851 = vtanh.pop %v787
            %v852 = vtanh.pop %v788
            %v853 = vtanh.pop %v789
            %v854 = vtanh.pop %v790
            %v855 = vtanh.pop %v791
            %v856 = vtanh.pop %v792
            %v857 = vtanh.pop %v793
            %v858 = vtanh.pop %v794
            %v859 = vtanh.pop %v795
            %v860 = vtanh.pop %v796
            %v861 = vtanh.pop %v797
            %v862 = vtanh.pop %v798
            %v863 = vtanh.pop %v799
            %v864 = vtanh.pop %v800
            %v865 = vtanh.pop %v801
            %v866 = vtanh.pop %v802
            %v867 = vtanh.pop %v803
            %v868 = vtanh.pop %v804
            %v869 = vtanh.pop %v805
            %v870 = vtanh.pop %v806
            %v871 = vtanh.pop %v807
            %v872 = vtanh.pop %v808
            %v873 = vtanh.pop %v809
            %v874 = vtanh.pop %v810
            %v875 = vtanh.pop %v811
            %v876 = vtanh.pop %v812
            %v877 = vtanh.pop %v813
            %v878 = vtanh.pop %v814
            %v879 = vtanh.pop %v815
            %v880 = vtanh.pop %v816
            %v881 = vtanh.pop %v817
            %v882 = vtanh.pop %v818
            %v883 = vtanh.pop %v819
            %v884 = vtanh.pop %v820
            %v885 = vtanh.pop %v821
            %v886 = vtanh.pop %v822
            %v887 = vtanh.pop %v823
            %v888 = vtanh.pop %v824
            %v889 = vtanh.pop %v825
            %v890 = vtanh.pop %v826
            %v891 = vtanh.pop %v827
            %v892 = vtanh.pop %v828
            %v893 = vtanh.pop %v829
            %v894 = vtanh.pop %v830
            %v895 = vtanh.pop %v831
            %v896 = vtanh.pop %v832
            %v897 = vtanh.pop %v833
            %v898 = vtanh.pop %v834
            %v899 = vtanh.pop %v835
            %v900 = vtanh.pop %v836
            %v901 = vtanh.pop %v837
            %v902 = vtanh.pop %v838
            %v903 = vtanh.pop %v839
            %v904 = vtanh.pop %v840
            %v905 = vtanh.pop %v841
            %v906 = vtanh.pop %v842
            %v907 = vtanh.pop %v843
            %v908 = vtanh.pop %v844
            %v909 = vtanh.pop %v845
            %v910 = vtanh.pop %v846
            %v911 = vadd.f32 %v847, 1.0
            %v912 = vadd.f32 %v848, 1.0
            %v913 = vadd.f32 %v849, 1.0
            %v914 = vadd.f32 %v850, 1.0
            %v915 = vadd.f32 %v851, 1.0
            %v916 = vadd.f32 %v852, 1.0
            %v917 = vadd.f32 %v853, 1.0
            %v918 = vadd.f32 %v854, 1.0
            %v919 = vadd.f32 %v855, 1.0
            %v920 = vadd.f32 %v856, 1.0
            %v921 = vadd.f32 %v857, 1.0
            %v922 = vadd.f32 %v858, 1.0
            %v923 = vadd.f32 %v859, 1.0
            %v924 = vadd.f32 %v860, 1.0
            %v925 = vadd.f32 %v861, 1.0
            %v926 = vadd.f32 %v862, 1.0
            %v927 = vadd.f32 %v863, 1.0
            %v928 = vadd.f32 %v864, 1.0
            %v929 = vadd.f32 %v865, 1.0
            %v930 = vadd.f32 %v866, 1.0
            %v931 = vadd.f32 %v867, 1.0
            %v932 = vadd.f32 %v868, 1.0
            %v933 = vadd.f32 %v869, 1.0
            %v934 = vadd.f32 %v870, 1.0
            %v935 = vadd.f32 %v871, 1.0
            %v936 = vadd.f32 %v872, 1.0
            %v937 = vadd.f32 %v873, 1.0
            %v938 = vadd.f32 %v874, 1.0
            %v939 = vadd.f32 %v875, 1.0
            %v940 = vadd.f32 %v876, 1.0
            %v941 = vadd.f32 %v877, 1.0
            %v942 = vadd.f32 %v878, 1.0
            %v943 = vadd.f32 %v879, 1.0
            %v944 = vadd.f32 %v880, 1.0
            %v945 = vadd.f32 %v881, 1.0
            %v946 = vadd.f32 %v882, 1.0
            %v947 = vadd.f32 %v883, 1.0
            %v948 = vadd.f32 %v884, 1.0
            %v949 = vadd.f32 %v885, 1.0
            %v950 = vadd.f32 %v886, 1.0
            %v951 = vadd.f32 %v887, 1.0
            %v952 = vadd.f32 %v888, 1.0
            %v953 = vadd.f32 %v889, 1.0
            %v954 = vadd.f32 %v890, 1.0
            %v955 = vadd.f32 %v891, 1.0
            %v956 = vadd.f32 %v892, 1.0
            %v957 = vadd.f32 %v893, 1.0
            %v958 = vadd.f32 %v894, 1.0
            %v959 = vadd.f32 %v895, 1.0
            %v960 = vadd.f32 %v896, 1.0
            %v961 = vadd.f32 %v897, 1.0
            %v962 = vadd.f32 %v898, 1.0
            %v963 = vadd.f32 %v899, 1.0
            %v964 = vadd.f32 %v900, 1.0
            %v965 = vadd.f32 %v901, 1.0
            %v966 = vadd.f32 %v902, 1.0
            %v967 = vadd.f32 %v903, 1.0
            %v968 = vadd.f32 %v904, 1.0
            %v969 = vadd.f32 %v905, 1.0
            %v970 = vadd.f32 %v906, 1.0
            %v971 = vadd.f32 %v907, 1.0
            %v972 = vadd.f32 %v908, 1.0
            %v973 = vadd.f32 %v909, 1.0
            %v974 = vadd.f32 %v910, 1.0
            %v975 = vmul.f32 %v783, %v911
            %v976 = vmul.f32 %v784, %v912
            %v977 = vmul.f32 %v785, %v913
            %v978 = vmul.f32 %v786, %v914
            %v979 = vmul.f32 %v787, %v915
            %v980 = vmul.f32 %v788, %v916
            %v981 = vmul.f32 %v789, %v917
            %v982 = vmul.f32 %v790, %v918
            %v983 = vmul.f32 %v791, %v919
            %v984 = vmul.f32 %v792, %v920
            %v985 = vmul.f32 %v793, %v921
            %v986 = vmul.f32 %v794, %v922
            %v987 = vmul.f32 %v795, %v923
            %v988 = vmul.f32 %v796, %v924
            %v989 = vmul.f32 %v797, %v925
            %v990 = vmul.f32 %v798, %v926
            %v991 = vmul.f32 %v799, %v927
            %v992 = vmul.f32 %v800, %v928
            %v993 = vmul.f32 %v801, %v929
            %v994 = vmul.f32 %v802, %v930
            %v995 = vmul.f32 %v803, %v931
            %v996 = vmul.f32 %v804, %v932
            %v997 = vmul.f32 %v805, %v933
            %v998 = vmul.f32 %v806, %v934
            %v999 = vmul.f32 %v807, %v935
            %v1000 = vmul.f32 %v808, %v936
            %v1001 = vmul.f32 %v809, %v937
            %v1002 = vmul.f32 %v810, %v938
            %v1003 = vmul.f32 %v811, %v939
            %v1004 = vmul.f32 %v812, %v940
            %v1005 = vmul.f32 %v813, %v941
            %v1006 = vmul.f32 %v814, %v942
            %v1007 = vmul.f32 %v815, %v943
            %v1008 = vmul.f32 %v816, %v944
            %v1009 = vmul.f32 %v817, %v945
            %v1010 = vmul.f32 %v818, %v946
            %v1011 = vmul.f32 %v819, %v947
            %v1012 = vmul.f32 %v820, %v948
            %v1013 = vmul.f32 %v821, %v949
            %v1014 = vmul.f32 %v822, %v950
            %v1015 = vmul.f32 %v823, %v951
            %v1016 = vmul.f32 %v824, %v952
            %v1017 = vmul.f32 %v825, %v953
            %v1018 = vmul.f32 %v826, %v954
            %v1019 = vmul.f32 %v827, %v955
            %v1020 = vmul.f32 %v828, %v956
            %v1021 = vmul.f32 %v829, %v957
            %v1022 = vmul.f32 %v830, %v958
            %v1023 = vmul.f32 %v831, %v959
            %v1024 = vmul.f32 %v832, %v960
            %v1025 = vmul.f32 %v833, %v961
            %v1026 = vmul.f32 %v834, %v962
            %v1027 = vmul.f32 %v835, %v963
            %v1028 = vmul.f32 %v836, %v964
            %v1029 = vmul.f32 %v837, %v965
            %v1030 = vmul.f32 %v838, %v966
            %v1031 = vmul.f32 %v839, %v967
            %v1032 = vmul.f32 %v840, %v968
            %v1033 = vmul.f32 %v841, %v969
            %v1034 = vmul.f32 %v842, %v970
            %v1035 = vmul.f32 %v843, %v971
            %v1036 = vmul.f32 %v844, %v972
            %v1037 = vmul.f32 %v845, %v973
            %v1038 = vmul.f32 %v846, %v974
            %v1039 = vadd.f32 %v975, %v976
            %v1040 = vadd.f32 %v1039, %v977
            %v1041 = vadd.f32 %v1040, %v978
            %v1042 = vadd.f32 %v1041, %v979
            %v1043 = vadd.f32 %v1042, %v980
            %v1044 = vadd.f32 %v1043, %v981
            %v1045 = vadd.f32 %v1044, %v982
            %v1046 = vrot.slane %v1045, 4
            %v1047 = vadd.f32 %v1045, %v1046
            %v1048 = vrot.slane %v1047, 2
            %v1049 = vadd.f32 %v1047, %v1048
            %v1050 = vrot.slane %v1049, 1
            %v1051 = vadd.f32 %v1049, %v1050
            %v1052 = vadd.f32 %v983, %v984
            %v1053 = vadd.f32 %v1052, %v985
            %v1054 = vadd.f32 %v1053, %v986
            %v1055 = vadd.f32 %v1054, %v987
            %v1056 = vadd.f32 %v1055, %v988
            %v1057 = vadd.f32 %v1056, %v989
            %v1058 = vadd.f32 %v1057, %v990
            %v1059 = vrot.slane %v1058, 4
            %v1060 = vadd.f32 %v1058, %v1059
            %v1061 = vrot.slane %v1060, 2
            %v1062 = vadd.f32 %v1060, %v1061
            %v1063 = vrot.slane %v1062, 1
            %v1064 = vadd.f32 %v1062, %v1063
            %v1065 = vadd.f32 %v991, %v992
            %v1066 = vadd.f32 %v1065, %v993
            %v1067 = vadd.f32 %v1066, %v994
            %v1068 = vadd.f32 %v1067, %v995
            %v1069 = vadd.f32 %v1068, %v996
            %v1070 = vadd.f32 %v1069, %v997
            %v1071 = vadd.f32 %v1070, %v998
            %v1072 = vrot.slane %v1071, 4
            %v1073 = vadd.f32 %v1071, %v1072
            %v1074 = vrot.slane %v1073, 2
            %v1075 = vadd.f32 %v1073, %v1074
            %v1076 = vrot.slane %v1075, 1
            %v1077 = vadd.f32 %v1075, %v1076
            %v1078 = vadd.f32 %v999, %v1000
            %v1079 = vadd.f32 %v1078, %v1001
            %v1080 = vadd.f32 %v1079, %v1002
            %v1081 = vadd.f32 %v1080, %v1003
            %v1082 = vadd.f32 %v1081, %v1004
            %v1083 = vadd.f32 %v1082, %v1005
            %v1084 = vadd.f32 %v1083, %v1006
            %v1085 = vrot.slane %v1084, 4
            %v1086 = vadd.f32 %v1084, %v1085
            %v1087 = vrot.slane %v1086, 2
            %v1088 = vadd.f32 %v1086, %v1087
            %v1089 = vrot.slane %v1088, 1
            %v1090 = vadd.f32 %v1088, %v1089
            %v1091 = vadd.f32 %v1007, %v1008
            %v1092 = vadd.f32 %v1091, %v1009
            %v1093 = vadd.f32 %v1092, %v1010
            %v1094 = vadd.f32 %v1093, %v1011
            %v1095 = vadd.f32 %v1094, %v1012
            %v1096 = vadd.f32 %v1095, %v1013
            %v1097 = vadd.f32 %v1096, %v1014
            %v1098 = vrot.slane %v1097, 4
            %v1099 = vadd.f32 %v1097, %v1098
            %v1100 = vrot.slane %v1099, 2
            %v1101 = vadd.f32 %v1099, %v1100
            %v1102 = vrot.slane %v1101, 1
            %v1103 = vadd.f32 %v1101, %v1102
            %v1104 = vadd.f32 %v1015, %v1016
            %v1105 = vadd.f32 %v1104, %v1017
            %v1106 = vadd.f32 %v1105, %v1018
            %v1107 = vadd.f32 %v1106, %v1019
            %v1108 = vadd.f32 %v1107, %v1020
            %v1109 = vadd.f32 %v1108, %v1021
            %v1110 = vadd.f32 %v1109, %v1022
            %v1111 = vrot.slane %v1110, 4
            %v1112 = vadd.f32 %v1110, %v1111
            %v1113 = vrot.slane %v1112, 2
            %v1114 = vadd.f32 %v1112, %v1113
            %v1115 = vrot.slane %v1114, 1
            %v1116 = vadd.f32 %v1114, %v1115
            %v1117 = vadd.f32 %v1023, %v1024
            %v1118 = vadd.f32 %v1117, %v1025
            %v1119 = vadd.f32 %v1118, %v1026
            %v1120 = vadd.f32 %v1119, %v1027
            %v1121 = vadd.f32 %v1120, %v1028
            %v1122 = vadd.f32 %v1121, %v1029
            %v1123 = vadd.f32 %v1122, %v1030
            %v1124 = vrot.slane %v1123, 4
            %v1125 = vadd.f32 %v1123, %v1124
            %v1126 = vrot.slane %v1125, 2
            %v1127 = vadd.f32 %v1125, %v1126
            %v1128 = vrot.slane %v1127, 1
            %v1129 = vadd.f32 %v1127, %v1128
            %v1130 = vadd.f32 %v1031, %v1032
            %v1131 = vadd.f32 %v1130, %v1033
            %v1132 = vadd.f32 %v1131, %v1034
            %v1133 = vadd.f32 %v1132, %v1035
            %v1134 = vadd.f32 %v1133, %v1036
            %v1135 = vadd.f32 %v1134, %v1037
            %v1136 = vadd.f32 %v1135, %v1038
            %v1137 = vrot.slane %v1136, 4
            %v1138 = vadd.f32 %v1136, %v1137
            %v1139 = vrot.slane %v1138, 2
            %v1140 = vadd.f32 %v1138, %v1139
            %v1141 = vrot.slane %v1140, 1
            %v1142 = vadd.f32 %v1140, %v1141
            %v1143 = vadd.f32 %v271, %v1051
            %v1144 = vadd.f32 %v272, %v1064
            %v1145 = vadd.f32 %v273, %v1077
            %v1146 = vadd.f32 %v274, %v1090
            %v1147 = vadd.f32 %v275, %v1103
            %v1148 = vadd.f32 %v276, %v1116
            %v1149 = vadd.f32 %v277, %v1129
            %v1150 = vadd.f32 %v278, %v1142
          $region52: #{tpu_custom_call.1} parent=44 // loop_footer
            %s270 = sadd.s32 1, %s266
          $region53: #{tpu_custom_call.1} parent=44 // loop_footer_branch
            %265 = sbr.rel target = $region49
          $region54: #{tpu_custom_call.1} parent=44 // loop_exit
            _
          %v1151 = vld [vmem:[%s220] sm:$0xff]
          %vm1160 = vcmask 1041409
          %v1161 = vsel %vm1160, %v272, %v271
          %vm1162 = vcmask 1042434
          %v1163 = vsel %vm1162, %v273, %v1161
          %vm1164 = vcmask 1043459
          %v1165 = vsel %vm1164, %v274, %v1163
          %vm1166 = vcmask 1044484
          %v1167 = vsel %vm1166, %v275, %v1165
          %vm1168 = vcmask 1045509
          %v1169 = vsel %vm1168, %v276, %v1167
          %vm1170 = vcmask 1046534
          %v1171 = vsel %vm1170, %v277, %v1169
          %vm1172 = vcmask 1047559
          %v1173 = vsel %vm1172, %v278, %v1171
          %v1175 = vand.u32 %v264, 4294901760
          %1176 = vmatpush.msra.mxu0 %v1175
          %v1177 = vand.u32 %v263, 4294901760
          %1178 = vmatpush.msra.mxu0 %v1177
          %v1179 = vand.u32 %v262, 4294901760
          %1180 = vmatpush.msra.mxu0 %v1179
          %v1181 = vand.u32 %v261, 4294901760
          %1182 = vmatpush.msra.mxu0 %v1181
          %v1183 = vand.u32 %v260, 4294901760
          %1184 = vmatpush.msra.mxu0 %v1183
          %v1185 = vand.u32 %v259, 4294901760
          %1186 = vmatpush.msra.mxu0 %v1185
          %v1187 = vand.u32 %v258, 4294901760
          %1188 = vmatpush.msra.mxu0 %v1187
          %v1189 = vand.u32 %v257, 4294901760
          %1190 = vmatpush.msra.mxu0 %v1189
          %v1191 = vand.u32 %v256, 4294901760
          %1192 = vmatpush.msra.mxu0 %v1191
          %v1193 = vand.u32 %v255, 4294901760
          %1194 = vmatpush.msra.mxu0 %v1193
          %v1195 = vand.u32 %v254, 4294901760
          %1196 = vmatpush.msra.mxu0 %v1195
          %v1197 = vand.u32 %v253, 4294901760
          %1198 = vmatpush.msra.mxu0 %v1197
          %v1199 = vand.u32 %v252, 4294901760
          %1200 = vmatpush.msra.mxu0 %v1199
          %v1201 = vand.u32 %v251, 4294901760
          %1202 = vmatpush.msra.mxu0 %v1201
          %v1203 = vand.u32 %v250, 4294901760
          %1204 = vmatpush.msra.mxu0 %v1203
          %v1205 = vand.u32 %v249, 4294901760
          %1206 = vmatpush.msra.mxu0 %v1205
          %v1207 = vand.u32 %v1173, 4294901760
          %v1208 = vsub.f32 %v1173, %v1207
          %v1209 = vand.u32 %v1208, 4294901760
          %v1210 = vsub.f32 %v1208, %v1209
          %v1211 = vand.u32 %v1210, 4294901760
          %1212 = vmatmul.f32.gmra.mxu0 %v1211
          %v1213 = vpop.f32.mrf.mxu0
          %v1214 = vadd.f32 0.0, %v1213
          %1215 = vdwg.mxu0
          %v1216 = vand.u32 %v264, 4294901760
          %v1217 = vsub.f32 %v264, %v1216
          %v1218 = vand.u32 %v1217, 4294901760
          %v1219 = vsub.f32 %v1217, %v1218
          %v1220 = vand.u32 %v1219, 4294901760
          %1221 = vmatpush.msra.mxu0 %v1220
          %v1222 = vand.u32 %v263, 4294901760
          %v1223 = vsub.f32 %v263, %v1222
          %v1224 = vand.u32 %v1223, 4294901760
          %v1225 = vsub.f32 %v1223, %v1224
          %v1226 = vand.u32 %v1225, 4294901760
          %1227 = vmatpush.msra.mxu0 %v1226
          %v1228 = vand.u32 %v262, 4294901760
          %v1229 = vsub.f32 %v262, %v1228
          %v1230 = vand.u32 %v1229, 4294901760
          %v1231 = vsub.f32 %v1229, %v1230
          %v1232 = vand.u32 %v1231, 4294901760
          %1233 = vmatpush.msra.mxu0 %v1232
          %v1234 = vand.u32 %v261, 4294901760
          %v1235 = vsub.f32 %v261, %v1234
          %v1236 = vand.u32 %v1235, 4294901760
          %v1237 = vsub.f32 %v1235, %v1236
          %v1238 = vand.u32 %v1237, 4294901760
          %1239 = vmatpush.msra.mxu0 %v1238
          %v1240 = vand.u32 %v260, 4294901760
          %v1241 = vsub.f32 %v260, %v1240
          %v1242 = vand.u32 %v1241, 4294901760
          %v1243 = vsub.f32 %v1241, %v1242
          %v1244 = vand.u32 %v1243, 4294901760
          %1245 = vmatpush.msra.mxu0 %v1244
          %v1246 = vand.u32 %v259, 4294901760
          %v1247 = vsub.f32 %v259, %v1246
          %v1248 = vand.u32 %v1247, 4294901760
          %v1249 = vsub.f32 %v1247, %v1248
          %v1250 = vand.u32 %v1249, 4294901760
          %1251 = vmatpush.msra.mxu0 %v1250
          %v1252 = vand.u32 %v258, 4294901760
          %v1253 = vsub.f32 %v258, %v1252
          %v1254 = vand.u32 %v1253, 4294901760
          %v1255 = vsub.f32 %v1253, %v1254
          %v1256 = vand.u32 %v1255, 4294901760
          %1257 = vmatpush.msra.mxu0 %v1256
          %v1258 = vand.u32 %v257, 4294901760
          %v1259 = vsub.f32 %v257, %v1258
          %v1260 = vand.u32 %v1259, 4294901760
          %v1261 = vsub.f32 %v1259, %v1260
          %v1262 = vand.u32 %v1261, 4294901760
          %1263 = vmatpush.msra.mxu0 %v1262
          %v1264 = vand.u32 %v256, 4294901760
          %v1265 = vsub.f32 %v256, %v1264
          %v1266 = vand.u32 %v1265, 4294901760
          %v1267 = vsub.f32 %v1265, %v1266
          %v1268 = vand.u32 %v1267, 4294901760
          %1269 = vmatpush.msra.mxu0 %v1268
          %v1270 = vand.u32 %v255, 4294901760
          %v1271 = vsub.f32 %v255, %v1270
          %v1272 = vand.u32 %v1271, 4294901760
          %v1273 = vsub.f32 %v1271, %v1272
          %v1274 = vand.u32 %v1273, 4294901760
          %1275 = vmatpush.msra.mxu0 %v1274
          %v1276 = vand.u32 %v254, 4294901760
          %v1277 = vsub.f32 %v254, %v1276
          %v1278 = vand.u32 %v1277, 4294901760
          %v1279 = vsub.f32 %v1277, %v1278
          %v1280 = vand.u32 %v1279, 4294901760
          %1281 = vmatpush.msra.mxu0 %v1280
          %v1282 = vand.u32 %v253, 4294901760
          %v1283 = vsub.f32 %v253, %v1282
          %v1284 = vand.u32 %v1283, 4294901760
          %v1285 = vsub.f32 %v1283, %v1284
          %v1286 = vand.u32 %v1285, 4294901760
          %1287 = vmatpush.msra.mxu0 %v1286
          %v1288 = vand.u32 %v252, 4294901760
          %v1289 = vsub.f32 %v252, %v1288
          %v1290 = vand.u32 %v1289, 4294901760
          %v1291 = vsub.f32 %v1289, %v1290
          %v1292 = vand.u32 %v1291, 4294901760
          %1293 = vmatpush.msra.mxu0 %v1292
          %v1294 = vand.u32 %v251, 4294901760
          %v1295 = vsub.f32 %v251, %v1294
          %v1296 = vand.u32 %v1295, 4294901760
          %v1297 = vsub.f32 %v1295, %v1296
          %v1298 = vand.u32 %v1297, 4294901760
          %1299 = vmatpush.msra.mxu0 %v1298
          %v1300 = vand.u32 %v250, 4294901760
          %v1301 = vsub.f32 %v250, %v1300
          %v1302 = vand.u32 %v1301, 4294901760
          %v1303 = vsub.f32 %v1301, %v1302
          %v1304 = vand.u32 %v1303, 4294901760
          %1305 = vmatpush.msra.mxu0 %v1304
          %v1306 = vand.u32 %v249, 4294901760
          %v1307 = vsub.f32 %v249, %v1306
          %v1308 = vand.u32 %v1307, 4294901760
          %v1309 = vsub.f32 %v1307, %v1308
          %v1310 = vand.u32 %v1309, 4294901760
          %1311 = vmatpush.msra.mxu0 %v1310
          %v1312 = vand.u32 %v1173, 4294901760
          %1313 = vmatmul.f32.gmra.mxu0 %v1312
          %v1314 = vpop.f32.mrf.mxu0
          %v1315 = vadd.f32 %v1214, %v1314
          %1316 = vdwg.mxu0
          %v1317 = vand.u32 %v264, 4294901760
          %v1318 = vsub.f32 %v264, %v1317
          %1319 = vmatpush.msra.mxu0 %v1318
          %v1320 = vand.u32 %v263, 4294901760
          %v1321 = vsub.f32 %v263, %v1320
          %1322 = vmatpush.msra.mxu0 %v1321
          %v1323 = vand.u32 %v262, 4294901760
          %v1324 = vsub.f32 %v262, %v1323
          %1325 = vmatpush.msra.mxu0 %v1324
          %v1326 = vand.u32 %v261, 4294901760
          %v1327 = vsub.f32 %v261, %v1326
          %1328 = vmatpush.msra.mxu0 %v1327
          %v1329 = vand.u32 %v260, 4294901760
          %v1330 = vsub.f32 %v260, %v1329
          %1331 = vmatpush.msra.mxu0 %v1330
          %v1332 = vand.u32 %v259, 4294901760
          %v1333 = vsub.f32 %v259, %v1332
          %1334 = vmatpush.msra.mxu0 %v1333
          %v1335 = vand.u32 %v258, 4294901760
          %v1336 = vsub.f32 %v258, %v1335
          %1337 = vmatpush.msra.mxu0 %v1336
          %v1338 = vand.u32 %v257, 4294901760
          %v1339 = vsub.f32 %v257, %v1338
          %1340 = vmatpush.msra.mxu0 %v1339
          %v1341 = vand.u32 %v256, 4294901760
          %v1342 = vsub.f32 %v256, %v1341
          %1343 = vmatpush.msra.mxu0 %v1342
          %v1344 = vand.u32 %v255, 4294901760
          %v1345 = vsub.f32 %v255, %v1344
          %1346 = vmatpush.msra.mxu0 %v1345
          %v1347 = vand.u32 %v254, 4294901760
          %v1348 = vsub.f32 %v254, %v1347
          %1349 = vmatpush.msra.mxu0 %v1348
          %v1350 = vand.u32 %v253, 4294901760
          %v1351 = vsub.f32 %v253, %v1350
          %1352 = vmatpush.msra.mxu0 %v1351
          %v1353 = vand.u32 %v252, 4294901760
          %v1354 = vsub.f32 %v252, %v1353
          %1355 = vmatpush.msra.mxu0 %v1354
          %v1356 = vand.u32 %v251, 4294901760
          %v1357 = vsub.f32 %v251, %v1356
          %1358 = vmatpush.msra.mxu0 %v1357
          %v1359 = vand.u32 %v250, 4294901760
          %v1360 = vsub.f32 %v250, %v1359
          %1361 = vmatpush.msra.mxu0 %v1360
          %v1362 = vand.u32 %v249, 4294901760
          %v1363 = vsub.f32 %v249, %v1362
          %1364 = vmatpush.msra.mxu0 %v1363
          %v1365 = vand.u32 %v1173, 4294901760
          %v1366 = vsub.f32 %v1173, %v1365
          %1367 = vmatmul.f32.gmra.mxu0 %v1366
          %v1368 = vpop.f32.mrf.mxu0
          %v1369 = vadd.f32 %v1315, %v1368
          %1370 = vdwg.mxu0
          %v1371 = vand.u32 %v264, 4294901760
          %1372 = vmatpush.msra.mxu0 %v1371
          %v1373 = vand.u32 %v263, 4294901760
          %1374 = vmatpush.msra.mxu0 %v1373
          %v1375 = vand.u32 %v262, 4294901760
          %1376 = vmatpush.msra.mxu0 %v1375
          %v1377 = vand.u32 %v261, 4294901760
          %1378 = vmatpush.msra.mxu0 %v1377
          %v1379 = vand.u32 %v260, 4294901760
          %1380 = vmatpush.msra.mxu0 %v1379
          %v1381 = vand.u32 %v259, 4294901760
          %1382 = vmatpush.msra.mxu0 %v1381
          %v1383 = vand.u32 %v258, 4294901760
          %1384 = vmatpush.msra.mxu0 %v1383
          %v1385 = vand.u32 %v257, 4294901760
          %1386 = vmatpush.msra.mxu0 %v1385
          %v1387 = vand.u32 %v256, 4294901760
          %1388 = vmatpush.msra.mxu0 %v1387
          %v1389 = vand.u32 %v255, 4294901760
          %1390 = vmatpush.msra.mxu0 %v1389
          %v1391 = vand.u32 %v254, 4294901760
          %1392 = vmatpush.msra.mxu0 %v1391
          %v1393 = vand.u32 %v253, 4294901760
          %1394 = vmatpush.msra.mxu0 %v1393
          %v1395 = vand.u32 %v252, 4294901760
          %1396 = vmatpush.msra.mxu0 %v1395
          %v1397 = vand.u32 %v251, 4294901760
          %1398 = vmatpush.msra.mxu0 %v1397
          %v1399 = vand.u32 %v250, 4294901760
          %1400 = vmatpush.msra.mxu0 %v1399
          %v1401 = vand.u32 %v249, 4294901760
          %1402 = vmatpush.msra.mxu0 %v1401
          %v1403 = vand.u32 %v1173, 4294901760
          %v1404 = vsub.f32 %v1173, %v1403
          %v1405 = vand.u32 %v1404, 4294901760
          %1406 = vmatmul.f32.gmra.mxu0 %v1405
          %v1407 = vpop.f32.mrf.mxu0
          %v1408 = vadd.f32 %v1369, %v1407
          %1409 = vdwg.mxu0
          %v1410 = vand.u32 %v264, 4294901760
          %v1411 = vsub.f32 %v264, %v1410
          %v1412 = vand.u32 %v1411, 4294901760
          %1413 = vmatpush.msra.mxu0 %v1412
          %v1414 = vand.u32 %v263, 4294901760
          %v1415 = vsub.f32 %v263, %v1414
          %v1416 = vand.u32 %v1415, 4294901760
          %1417 = vmatpush.msra.mxu0 %v1416
          %v1418 = vand.u32 %v262, 4294901760
          %v1419 = vsub.f32 %v262, %v1418
          %v1420 = vand.u32 %v1419, 4294901760
          %1421 = vmatpush.msra.mxu0 %v1420
          %v1422 = vand.u32 %v261, 4294901760
          %v1423 = vsub.f32 %v261, %v1422
          %v1424 = vand.u32 %v1423, 4294901760
          %1425 = vmatpush.msra.mxu0 %v1424
          %v1426 = vand.u32 %v260, 4294901760
          %v1427 = vsub.f32 %v260, %v1426
          %v1428 = vand.u32 %v1427, 4294901760
          %1429 = vmatpush.msra.mxu0 %v1428
          %v1430 = vand.u32 %v259, 4294901760
          %v1431 = vsub.f32 %v259, %v1430
          %v1432 = vand.u32 %v1431, 4294901760
          %1433 = vmatpush.msra.mxu0 %v1432
          %v1434 = vand.u32 %v258, 4294901760
          %v1435 = vsub.f32 %v258, %v1434
          %v1436 = vand.u32 %v1435, 4294901760
          %1437 = vmatpush.msra.mxu0 %v1436
          %v1438 = vand.u32 %v257, 4294901760
          %v1439 = vsub.f32 %v257, %v1438
          %v1440 = vand.u32 %v1439, 4294901760
          %1441 = vmatpush.msra.mxu0 %v1440
          %v1442 = vand.u32 %v256, 4294901760
          %v1443 = vsub.f32 %v256, %v1442
          %v1444 = vand.u32 %v1443, 4294901760
          %1445 = vmatpush.msra.mxu0 %v1444
          %v1446 = vand.u32 %v255, 4294901760
          %v1447 = vsub.f32 %v255, %v1446
          %v1448 = vand.u32 %v1447, 4294901760
          %1449 = vmatpush.msra.mxu0 %v1448
          %v1450 = vand.u32 %v254, 4294901760
          %v1451 = vsub.f32 %v254, %v1450
          %v1452 = vand.u32 %v1451, 4294901760
          %1453 = vmatpush.msra.mxu0 %v1452
          %v1454 = vand.u32 %v253, 4294901760
          %v1455 = vsub.f32 %v253, %v1454
          %v1456 = vand.u32 %v1455, 4294901760
          %1457 = vmatpush.msra.mxu0 %v1456
          %v1458 = vand.u32 %v252, 4294901760
          %v1459 = vsub.f32 %v252, %v1458
          %v1460 = vand.u32 %v1459, 4294901760
          %1461 = vmatpush.msra.mxu0 %v1460
          %v1462 = vand.u32 %v251, 4294901760
          %v1463 = vsub.f32 %v251, %v1462
          %v1464 = vand.u32 %v1463, 4294901760
          %1465 = vmatpush.msra.mxu0 %v1464
          %v1466 = vand.u32 %v250, 4294901760
          %v1467 = vsub.f32 %v250, %v1466
          %v1468 = vand.u32 %v1467, 4294901760
          %1469 = vmatpush.msra.mxu0 %v1468
          %v1470 = vand.u32 %v249, 4294901760
          %v1471 = vsub.f32 %v249, %v1470
          %v1472 = vand.u32 %v1471, 4294901760
          %1473 = vmatpush.msra.mxu0 %v1472
          %v1474 = vand.u32 %v1173, 4294901760
          %1475 = vmatmul.f32.gmra.mxu0 %v1474
          %v1476 = vpop.f32.mrf.mxu0
          %v1477 = vadd.f32 %v1408, %v1476
          %1478 = vdwg.mxu0
          %v1479 = vand.u32 %v264, 4294901760
          %1480 = vmatpush.msra.mxu0 %v1479
          %v1481 = vand.u32 %v263, 4294901760
          %1482 = vmatpush.msra.mxu0 %v1481
          %v1483 = vand.u32 %v262, 4294901760
          %1484 = vmatpush.msra.mxu0 %v1483
          %v1485 = vand.u32 %v261, 4294901760
          %1486 = vmatpush.msra.mxu0 %v1485
          %v1487 = vand.u32 %v260, 4294901760
          %1488 = vmatpush.msra.mxu0 %v1487
          %v1489 = vand.u32 %v259, 4294901760
          %1490 = vmatpush.msra.mxu0 %v1489
          %v1491 = vand.u32 %v258, 4294901760
          %1492 = vmatpush.msra.mxu0 %v1491
          %v1493 = vand.u32 %v257, 4294901760
          %1494 = vmatpush.msra.mxu0 %v1493
          %v1495 = vand.u32 %v256, 4294901760
          %1496 = vmatpush.msra.mxu0 %v1495
          %v1497 = vand.u32 %v255, 4294901760
          %1498 = vmatpush.msra.mxu0 %v1497
          %v1499 = vand.u32 %v254, 4294901760
          %1500 = vmatpush.msra.mxu0 %v1499
          %v1501 = vand.u32 %v253, 4294901760
          %1502 = vmatpush.msra.mxu0 %v1501
          %v1503 = vand.u32 %v252, 4294901760
          %1504 = vmatpush.msra.mxu0 %v1503
          %v1505 = vand.u32 %v251, 4294901760
          %1506 = vmatpush.msra.mxu0 %v1505
          %v1507 = vand.u32 %v250, 4294901760
          %1508 = vmatpush.msra.mxu0 %v1507
          %v1509 = vand.u32 %v249, 4294901760
          %1510 = vmatpush.msra.mxu0 %v1509
          %v1511 = vand.u32 %v1173, 4294901760
          %1512 = vmatmul.f32.gmra.mxu0 %v1511
          %v1513 = vpop.f32.mrf.mxu0
          %v1514 = vadd.f32 %v1477, %v1513
          %1515 = vdwg.mxu0
          %v1516 = vadd.f32 %v1151, %v1514
          %1517 = vst [vmem:[%s220] sm:$0xff] %v1516
        $region45: #{tpu_custom_call.1} parent=39 // loop_footer
          %s239 = sadd.s32 1, %s235
        $region46: #{tpu_custom_call.1} parent=39 // loop_footer_branch
          %234 = sbr.rel target = $region42
        $region47: #{tpu_custom_call.1} parent=39 // loop_exit
          _
        %s1518 = sand.u32 %s137, 1
        %s1519 = scalar_lea.sflag [#allocation3], %s1518
        %s1520 = sand.u32 %s137, 1
        %s1521 = smul.addr %s1520, 8
        %s1522 = scalar_lea.vmem [#allocation2], %s1521
        // Predicated region
        $region55: #{tpu_custom_call.1} parent=39 // pred_check
          %p1523 = pneg %p147
        $region56: #{tpu_custom_call.1} parent=39 // pred_check_branch
          %1525 = sbr.rel (%p1523) target = $region58
        $region57: #{tpu_custom_call.1} parent=39 // pred_region
          %1527 = vsyncadd %s1519, 0
          %s1528 = smul.addr %s19, 8
          %s1529 = scalar_lea.hbm %s5, %s1528
          %s1531 = sshll.u32 %s1522, 4
          %s1532 = int_to_ptr.vmem [resolvable:$true] %s1531
          %s1533 = sshll.u32 %s1529, 4
          %s1534 = int_to_ptr.hbm [resolvable:$true] %s1533
          %1536 = dma.vmem_to_hbm [thread:$0]  %s1532, 128, %s1534, %s1519
        $region58: #{tpu_custom_call.1} parent=39 // pred_fallthru
          _
      $region40: #{tpu_custom_call.1} parent=5 // pred_fallthru
        _
      %p1537 = scmp.le.s32.totalorder 2, %s14
      // Predicated region
      $region59: #{tpu_custom_call.1} parent=5 // pred_check
        %p1538 = pneg %p1537
      $region60: #{tpu_custom_call.1} parent=5 // pred_check_branch
        %1540 = sbr.rel (%p1538) target = $region62
      $region61: #{tpu_custom_call.1} parent=5 // pred_region
        %s1541 = ssub.s32 %s14, 2
        // Predicated region
        $region63: #{tpu_custom_call.1} parent=61 // pred_check
          %p1542 = pneg %p153
        $region64: #{tpu_custom_call.1} parent=61 // pred_check_branch
          %1544 = sbr.rel (%p1542) target = $region66
        $region65: #{tpu_custom_call.1} parent=61 // pred_region
          %s1545 = sand.u32 %s138, 1
          %s1546 = scalar_lea.sflag [#allocation3], %s1545
          %s1547 = sand.u32 %s138, 1
          %s1548 = smul.addr %s1547, 8
          %s1549 = scalar_lea.vmem [#allocation2], %s1548
          %1551 = dma.done %s1546, 128
        $region66: #{tpu_custom_call.1} parent=61 // pred_fallthru
          _
      $region62: #{tpu_custom_call.1} parent=5 // pred_fallthru
        _
    $region6: #{tpu_custom_call.1} parent=1 // loop_footer
      %s18 = sadd.s32 1, %s14
    $region7: #{tpu_custom_call.1} parent=1 // loop_footer_branch
      %13 = sbr.rel target = $region3
    $region8: #{tpu_custom_call.1} parent=1 // loop_exit
      _
    %1552 = vsyncpa [#allocation3], 1
    %s1553 = scalar_lea.sflag [#allocation3], 1
    %1554 = vsyncpa %s1553, 1

</llo_original>
